<compile_context>
chip_gen: v6e
topology: v6e:2x2x1
jax: 0.10.0
libtpu: 0.0.40
codegen_flags: <defaults>
</compile_context>

<pallas_src>
import jax
import jax.numpy as jnp
from jax.experimental import pallas as pl
from jax.experimental.pallas import tpu as pltpu


def actor_forward_kernel(x_ref, w1_ref, b1_ref, w2_ref, b2_ref, w3_ref, b3_ref,
                         probs_ref):
    """Fused MLP (3x Linear + ReLU) + softmax over a [tb, 128] lane-dense slab."""
    x = x_ref[...]                                   # [tb, S]   f32
    w1 = w1_ref[...]                                 # [S, H]    f32

    # fc1 + ReLU on the VPU: K = n_states is tiny, an MXU pass would be ~3%
    # useful after K-padding to 128.  S static broadcast FMAs instead.
    h1 = b1_ref[...]                                 # [1, H] -> broadcast
    for k in range(x.shape[1]):                      # static, n_states small
        h1 = h1 + x[:, k:k + 1] * w1[k:k + 1, :]
    h1 = jnp.maximum(h1, 0.0)                        # [tb, H]  f32

    # fc2 + ReLU: bf16 operands into the MXU, f32 accumulation.
    h2 = jnp.dot(h1.astype(jnp.bfloat16), w2_ref[...],
                 preferred_element_type=jnp.float32)
    h2 = jnp.maximum(h2 + b2_ref[...], 0.0)          # [tb, H]  f32

    # fc3 (logits). Action dim is padded to 128 lanes; the padded bias columns
    # are -1e30 so they contribute exp()==0 to the softmax denominator.
    logits = jnp.dot(h2.astype(jnp.bfloat16), w3_ref[...],
                     preferred_element_type=jnp.float32)
    logits = logits + b3_ref[...]                    # [tb, 128] f32

    # numerically-stable softmax over the (padded) action axis
    m = jnp.max(logits, axis=-1, keepdims=True)
    e = jnp.exp(logits - m)
    denom = jnp.sum(e, axis=-1, keepdims=True)
    probs_ref[...] = e * pl.reciprocal(denom, approx=True)


def actor_forward(x, params, *, tile_b=256):
    """Batched forward: grid over batch tiles, weights VMEM-resident."""
    w1, b1, w2, b2, w3, b3 = params
    B, S = x.shape
    H = w1.shape[1]
    A = w3.shape[1]
    LANES = 128
    assert A <= LANES, "action dim padded to one 128-lane group"

    tb = min(tile_b, B)
    assert B % tb == 0 and tb % 8 == 0
    grid = (B // tb,)

    # Lane-dense output columns: pad action dim to 128; padded bias -1e30.
    w3p = jnp.zeros((H, LANES), jnp.float32).at[:, :A].set(w3).astype(jnp.bfloat16)
    b3p = jnp.full((1, LANES), -1e30, jnp.float32).at[:, :A].set(b3)
    w2b = w2.astype(jnp.bfloat16)

    flops = 2 * B * (S * H + H * H + H * LANES)
    bytes_accessed = (x.size * 4 + w1.size * 4 + b1.size * 4
                      + w2b.size * 2 + b2.size * 4
                      + w3p.size * 2 + b3p.size * 4
                      + B * LANES * 4)
    cost = pl.CostEstimate(flops=flops,
                           transcendentals=B * LANES,     # exp per output lane
                           bytes_accessed=bytes_accessed)

    def resident(shape):
        # constant block index across the batch grid -> loaded once, stays in VMEM
        return pl.BlockSpec(shape, lambda i: (0,) * len(shape))

    probs_padded = pl.pallas_call(
        actor_forward_kernel,
        out_shape=jax.ShapeDtypeStruct((B, LANES), jnp.float32),
        grid_spec=pl.GridSpec(
            grid=grid,
            in_specs=[
                pl.BlockSpec((tb, S), lambda i: (i, 0)),   # x streamed per tile
                resident((S, H)), resident((1, H)),        # fc1
                resident((H, H)), resident((1, H)),        # fc2
                resident((H, LANES)), resident((1, LANES)) # fc3 (padded)
            ],
            out_specs=pl.BlockSpec((tb, LANES), lambda i: (i, 0)),
        ),
        compiler_params=pltpu.CompilerParams(
            dimension_semantics=("parallel",)),  # batch tiles shard on v7x 2 TCs
        cost_estimate=cost,
    )(x, w1, b1, w2b, b2, w3p, b3p)

    return probs_padded[:, :A]


def init_params(key, n_states, n_actions, hidden_dim):
    """Deterministic synthetic init (PyTorch-Linear-like uniform scaling)."""
    ks = jax.random.split(key, 6)

    def linear(kw, kb, fan_in, fan_out):
        bound = 1.0 / jnp.sqrt(jnp.float32(fan_in))
        w = jax.random.uniform(kw, (fan_in, fan_out), jnp.float32, -bound, bound)
        b = jax.random.uniform(kb, (1, fan_out), jnp.float32, -bound, bound)
        return w, b

    w1, b1 = linear(ks[0], ks[1], n_states, hidden_dim)
    w2, b2 = linear(ks[2], ks[3], hidden_dim, hidden_dim)
    w3, b3 = linear(ks[4], ks[5], hidden_dim, n_actions)
    return (w1, b1, w2, b2, w3, b3)


def reference_forward(x, params):
    """Pure-JAX f32 reference for correctness check."""
    w1, b1, w2, b2, w3, b3 = params
    h1 = jnp.maximum(x @ w1 + b1, 0.0)
    h2 = jnp.maximum(h1 @ w2 + b2, 0.0)
    logits = h2 @ w3 + b3
    return jax.nn.softmax(logits, axis=-1)


if __name__ == "__main__":
    # CartPole-v1: n_states=4, n_actions=2; hidden_dim default 128.
    # Batch a vectorized-env-sized number of states so the kernel is not
    # purely launch-overhead-bound; grid=(2,) tiles of 256 rows each.
    n_states, n_actions, hidden_dim = 4, 2, 128
    batch, tile_b = 512, 256

    key = jax.random.PRNGKey(0)
    k_x, k_p = jax.random.split(key)
    x = jax.random.normal(k_x, (batch, n_states), dtype=jnp.float32)
    params = init_params(k_p, n_states, n_actions, hidden_dim)

    probs = actor_forward(x, params, tile_b=tile_b)
    probs = jax.block_until_ready(probs)

    # sanity check against pure-JAX f32 reference (tolerances account for the
    # bf16 MXU operands and the EUP approx reciprocal in the softmax)
    ref = reference_forward(x, params)
    assert probs.shape == (batch, n_actions)
    assert jnp.allclose(probs, ref, atol=2e-2, rtol=2e-2)
    assert jnp.allclose(jnp.sum(probs, axis=-1), 1.0, atol=2e-3)

    # TODO(synk): torch.distributions.Categorical wrapper (sampling / log_prob)
    # is host-side API glue, not kernel compute; the kernel returns its `probs`.
    print("KERNEL_OK")
</pallas_src>

<mosaic_0001>
module attributes {stable_mosaic.version = 11 : i64} {
  func.func @actor_forward_kernel(%arg0: i32, %arg1: memref<256x4xf32, #tpu.memory_space<vmem>>, %arg2: memref<4x128xf32, #tpu.memory_space<vmem>>, %arg3: memref<1x128xf32, #tpu.memory_space<vmem>>, %arg4: memref<128x128xbf16, #tpu.memory_space<vmem>>, %arg5: memref<1x128xf32, #tpu.memory_space<vmem>>, %arg6: memref<128x128xbf16, #tpu.memory_space<vmem>>, %arg7: memref<1x128xf32, #tpu.memory_space<vmem>>, %arg8: memref<256x128xf32, #tpu.memory_space<vmem>>) attributes {dimension_semantics = [#tpu.dimension_semantics<parallel>], iteration_bounds = array<i64: 2>, scalar_prefetch = 0 : i64, scratch_operands = 0 : i64, tpu.core_type = #tpu.core_type<tc>, window_params = [{transform_indices = @transform_0, window_bounds = array<i64: 256, 4>}, {pipeline_mode = #tpu.pipeline_mode<synchronous>, transform_indices = @transform_1, window_bounds = array<i64: 4, 128>}, {pipeline_mode = #tpu.pipeline_mode<synchronous>, transform_indices = @transform_2, window_bounds = array<i64: 1, 128>}, {pipeline_mode = #tpu.pipeline_mode<synchronous>, transform_indices = @transform_3, window_bounds = array<i64: 128, 128>}, {pipeline_mode = #tpu.pipeline_mode<synchronous>, transform_indices = @transform_4, window_bounds = array<i64: 1, 128>}, {pipeline_mode = #tpu.pipeline_mode<synchronous>, transform_indices = @transform_5, window_bounds = array<i64: 128, 128>}, {pipeline_mode = #tpu.pipeline_mode<synchronous>, transform_indices = @transform_6, window_bounds = array<i64: 1, 128>}, {transform_indices = @transform_7, window_bounds = array<i64: 256, 128>}]} {
    %c0 = arith.constant 0 : index
    %c0_0 = arith.constant 0 : index
    %0 = vector.load %arg1[%c0, %c0_0] : memref<256x4xf32, #tpu.memory_space<vmem>>, vector<256x4xf32>
    %c0_1 = arith.constant 0 : index
    %c0_2 = arith.constant 0 : index
    %1 = vector.load %arg2[%c0_1, %c0_2] : memref<4x128xf32, #tpu.memory_space<vmem>>, vector<4x128xf32>
    %c0_3 = arith.constant 0 : index
    %c0_4 = arith.constant 0 : index
    %2 = vector.load %arg3[%c0_3, %c0_4] : memref<1x128xf32, #tpu.memory_space<vmem>>, vector<1x128xf32>
    %3 = vector.extract_strided_slice %0 {offsets = [0, 0], sizes = [256, 1], strides = [1, 1]} : vector<256x4xf32> to vector<256x1xf32>
    %4 = vector.extract_strided_slice %1 {offsets = [0, 0], sizes = [1, 128], strides = [1, 1]} : vector<4x128xf32> to vector<1x128xf32>
    %5 = vector.broadcast %3 : vector<256x1xf32> to vector<256x128xf32>
    %6 = vector.broadcast %4 : vector<1x128xf32> to vector<256x128xf32>
    %7 = arith.mulf %5, %6 : vector<256x128xf32>
    %8 = vector.broadcast %2 : vector<1x128xf32> to vector<256x128xf32>
    %9 = arith.addf %8, %7 : vector<256x128xf32>
    %10 = vector.extract_strided_slice %0 {offsets = [0, 1], sizes = [256, 1], strides = [1, 1]} : vector<256x4xf32> to vector<256x1xf32>
    %11 = vector.extract_strided_slice %1 {offsets = [1, 0], sizes = [1, 128], strides = [1, 1]} : vector<4x128xf32> to vector<1x128xf32>
    %12 = vector.broadcast %10 : vector<256x1xf32> to vector<256x128xf32>
    %13 = vector.broadcast %11 : vector<1x128xf32> to vector<256x128xf32>
    %14 = arith.mulf %12, %13 : vector<256x128xf32>
    %15 = arith.addf %9, %14 : vector<256x128xf32>
    %16 = vector.extract_strided_slice %0 {offsets = [0, 2], sizes = [256, 1], strides = [1, 1]} : vector<256x4xf32> to vector<256x1xf32>
    %17 = vector.extract_strided_slice %1 {offsets = [2, 0], sizes = [1, 128], strides = [1, 1]} : vector<4x128xf32> to vector<1x128xf32>
    %18 = vector.broadcast %16 : vector<256x1xf32> to vector<256x128xf32>
    %19 = vector.broadcast %17 : vector<1x128xf32> to vector<256x128xf32>
    %20 = arith.mulf %18, %19 : vector<256x128xf32>
    %21 = arith.addf %15, %20 : vector<256x128xf32>
    %22 = vector.extract_strided_slice %0 {offsets = [0, 3], sizes = [256, 1], strides = [1, 1]} : vector<256x4xf32> to vector<256x1xf32>
    %23 = vector.extract_strided_slice %1 {offsets = [3, 0], sizes = [1, 128], strides = [1, 1]} : vector<4x128xf32> to vector<1x128xf32>
    %24 = vector.broadcast %22 : vector<256x1xf32> to vector<256x128xf32>
    %25 = vector.broadcast %23 : vector<1x128xf32> to vector<256x128xf32>
    %26 = arith.mulf %24, %25 : vector<256x128xf32>
    %27 = arith.addf %21, %26 : vector<256x128xf32>
    %cst = arith.constant 0.000000e+00 : f32
    %28 = vector.broadcast %cst : f32 to vector<256x128xf32>
    %29 = arith.maximumf %27, %28 : vector<256x128xf32>
    %30 = arith.truncf %29 : vector<256x128xf32> to vector<256x128xbf16>
    %c0_5 = arith.constant 0 : index
    %c0_6 = arith.constant 0 : index
    %31 = vector.load %arg4[%c0_5, %c0_6] : memref<128x128xbf16, #tpu.memory_space<vmem>>, vector<128x128xbf16>
    %cst_7 = arith.constant dense<0.000000e+00> : vector<256x128xf32>
    %32 = tpu.matmul %30, %31, %cst_7 {dimension_numbers = #tpu.dot_dimension_numbers<[1], [0], [0], [1], [0, 0, 1, 1], [], []>} : vector<256x128xbf16>, vector<128x128xbf16>, vector<256x128xf32> -> vector<256x128xf32>
    %c0_8 = arith.constant 0 : index
    %c0_9 = arith.constant 0 : index
    %33 = vector.load %arg5[%c0_8, %c0_9] : memref<1x128xf32, #tpu.memory_space<vmem>>, vector<1x128xf32>
    %34 = vector.broadcast %33 : vector<1x128xf32> to vector<256x128xf32>
    %35 = arith.addf %32, %34 : vector<256x128xf32>
    %cst_10 = arith.constant 0.000000e+00 : f32
    %36 = vector.broadcast %cst_10 : f32 to vector<256x128xf32>
    %37 = arith.maximumf %35, %36 : vector<256x128xf32>
    %38 = arith.truncf %37 : vector<256x128xf32> to vector<256x128xbf16>
    %c0_11 = arith.constant 0 : index
    %c0_12 = arith.constant 0 : index
    %39 = vector.load %arg6[%c0_11, %c0_12] : memref<128x128xbf16, #tpu.memory_space<vmem>>, vector<128x128xbf16>
    %cst_13 = arith.constant dense<0.000000e+00> : vector<256x128xf32>
    %40 = tpu.matmul %38, %39, %cst_13 {dimension_numbers = #tpu.dot_dimension_numbers<[1], [0], [0], [1], [0, 0, 1, 1], [], []>} : vector<256x128xbf16>, vector<128x128xbf16>, vector<256x128xf32> -> vector<256x128xf32>
    %c0_14 = arith.constant 0 : index
    %c0_15 = arith.constant 0 : index
    %41 = vector.load %arg7[%c0_14, %c0_15] : memref<1x128xf32, #tpu.memory_space<vmem>>, vector<1x128xf32>
    %42 = vector.broadcast %41 : vector<1x128xf32> to vector<256x128xf32>
    %43 = arith.addf %40, %42 : vector<256x128xf32>
    %cst_16 = arith.constant dense<0xFF800000> : vector<256xf32>
    %44 = vector.multi_reduction <maximumf>, %43, %cst_16 [1] : vector<256x128xf32> to vector<256xf32>
    %45 = vector.shape_cast %44 : vector<256xf32> to vector<256x1xf32>
    %46 = vector.broadcast %45 : vector<256x1xf32> to vector<256x128xf32>
    %47 = arith.subf %43, %46 : vector<256x128xf32>
    %48 = math.exp %47 : vector<256x128xf32>
    %cst_17 = arith.constant dense<0.000000e+00> : vector<256xf32>
    %49 = vector.multi_reduction <add>, %48, %cst_17 [1] : vector<256x128xf32> to vector<256xf32>
    %50 = vector.shape_cast %49 : vector<256xf32> to vector<256x1xf32>
    %51 = tpu.reciprocal %50 {approx = true} : vector<256x1xf32> -> vector<256x1xf32>
    %52 = vector.broadcast %51 : vector<256x1xf32> to vector<256x128xf32>
    %53 = arith.mulf %48, %52 : vector<256x128xf32>
    %c0_18 = arith.constant 0 : index
    %c0_19 = arith.constant 0 : index
    %54 = vector.load %arg8[%c0_18, %c0_19] : memref<256x128xf32, #tpu.memory_space<vmem>>, vector<256x128xf32>
    tpu.vector_store %arg8[%c0_18, %c0_19], %53 {strides = array<i32>} : memref<256x128xf32, #tpu.memory_space<vmem>>, vector<256x128xf32>,
    return
  }
  func.func @transform_0(%arg0: i32) -> (i32, i32) {
    %c0_i32 = arith.constant 0 : i32
    %c0_i32_0 = arith.constant 0 : i32
    return %arg0, %c0_i32 : i32, i32
  }
  func.func @transform_1(%arg0: i32) -> (i32, i32) {
    %c0_i32 = arith.constant 0 : i32
    %c0_i32_0 = arith.constant 0 : i32
    %c0_i32_1 = arith.constant 0 : i32
    return %c0_i32, %c0_i32_0 : i32, i32
  }
  func.func @transform_2(%arg0: i32) -> (i32, i32) {
    %c0_i32 = arith.constant 0 : i32
    %c0_i32_0 = arith.constant 0 : i32
    %c0_i32_1 = arith.constant 0 : i32
    return %c0_i32, %c0_i32_0 : i32, i32
  }
  func.func @transform_3(%arg0: i32) -> (i32, i32) {
    %c0_i32 = arith.constant 0 : i32
    %c0_i32_0 = arith.constant 0 : i32
    %c0_i32_1 = arith.constant 0 : i32
    return %c0_i32, %c0_i32_0 : i32, i32
  }
  func.func @transform_4(%arg0: i32) -> (i32, i32) {
    %c0_i32 = arith.constant 0 : i32
    %c0_i32_0 = arith.constant 0 : i32
    %c0_i32_1 = arith.constant 0 : i32
    return %c0_i32, %c0_i32_0 : i32, i32
  }
  func.func @transform_5(%arg0: i32) -> (i32, i32) {
    %c0_i32 = arith.constant 0 : i32
    %c0_i32_0 = arith.constant 0 : i32
    %c0_i32_1 = arith.constant 0 : i32
    return %c0_i32, %c0_i32_0 : i32, i32
  }
  func.func @transform_6(%arg0: i32) -> (i32, i32) {
    %c0_i32 = arith.constant 0 : i32
    %c0_i32_0 = arith.constant 0 : i32
    %c0_i32_1 = arith.constant 0 : i32
    return %c0_i32, %c0_i32_0 : i32, i32
  }
  func.func @transform_7(%arg0: i32) -> (i32, i32) {
    %c0_i32 = arith.constant 0 : i32
    %c0_i32_0 = arith.constant 0 : i32
    return %arg0, %c0_i32 : i32, i32
  }
}

</mosaic_0001>

<llo_original>
// kernel: tpu_custom_call.1
$region0: #{tpu_custom_call.1}
  #allocation0 [shape = 'u32[]', space=smem, size = 0x4, offset = 0x4, fixed_abs, tag = 'smem constant byte address 0x4 - core index']
  #allocation1 [shape = 'u32[144,128]{1,0:T(1,128)}', space=vmem, size = 0x12000, scoped, tag = 'internal scratch']
  %s0 = inlined_call_operand.vmem [shape: f32[512,4], index: 0, kind: input, shape index: {}]
  %s1 = inlined_call_operand.vmem [shape: f32[4,128], index: 1, kind: input, shape index: {}]
  %s2 = inlined_call_operand.vmem [shape: f32[1,128], index: 2, kind: input, shape index: {}]
  %s3 = inlined_call_operand.vmem [shape: bf16[128,128], index: 3, kind: input, shape index: {}]
  %s4 = inlined_call_operand.vmem [shape: f32[1,128], index: 4, kind: input, shape index: {}]
  %s5 = inlined_call_operand.vmem [shape: bf16[128,128], index: 5, kind: input, shape index: {}]
  %s6 = inlined_call_operand.vmem [shape: f32[1,128], index: 6, kind: input, shape index: {}]
  %s7 = inlined_call_operand.hbm [shape: f32[512,128], index: 7, kind: output, shape index: {}]
  %s8 = sld [smem:[#allocation0]]
  $region61: #{tpu_custom_call.1} parent=0
    _
  %s10 = ssub.s32 1, %s8
  %s11 = scalar_select 0, %s10, %s8
  $region1: #{tpu_custom_call.1} parent=0
    #allocation2 [shape = 'u8[262144]{0}', space=vmem, size = 0x40000, scoped, tag = 'output window, operand 0']
    #allocation3 [shape = 's32[2]{0}', space=sflag, size = 0x8, scoped, tag = 'scoped memory for tpu_custom_call.1']
    %12 = vsyncpa [#allocation3], 0
    %s13 = scalar_lea.sflag [#allocation3], 1
    %14 = vsyncpa %s13, 0
    loop: start=0, step=1, limit=4
    $region2: #{tpu_custom_call.1} parent=1 // loop_pre_header
      _
    $region3: #{tpu_custom_call.1} parent=1 // loop_header
      %s16 = sphi 0, %s20
      %p17 = scmp.ge.s32.totalorder %s16, 4
      %s26 = sphi 0, %s28
      %s29 = sphi 0, %s26
      %s30 = sphi 0, %s29
      %s46 = sphi 0, %s30
      %s50 = sphi 0, %s50
      %s52 = sphi 0, %s50
      %s53 = sphi 0, %s52
      %s67 = sphi 0, %s53
      %s71 = sphi 0, %s71
      %s73 = sphi 0, %s71
      %s74 = sphi 0, %s73
      %s88 = sphi 0, %s74
      %s92 = sphi 0, %s92
      %s94 = sphi 0, %s92
      %s95 = sphi 0, %s94
      %s109 = sphi 0, %s95
      %s113 = sphi 0, %s113
      %s115 = sphi 0, %s113
      %s116 = sphi 0, %s115
      %s130 = sphi 0, %s116
      %s134 = sphi 0, %s134
      %s136 = sphi 0, %s134
      %s137 = sphi 0, %s136
      %s151 = sphi 0, %s137
      %s155 = sphi 0, %s155
      %s157 = sphi 0, %s155
      %s158 = sphi 0, %s157
      %s172 = sphi 0, %s158
      %s178 = sphi 0, %s180
      %s181 = sphi 0, %s178
      %s182 = sphi 0, %s181
      %s198 = sphi 0, %s182
    $region4: #{tpu_custom_call.1} parent=1 // loop_header_branch
      %19 = sbr.rel (%p17) target = $region8
    $region5: #{tpu_custom_call.1} parent=1 // loop_body
      %s21 = ssub.s32 %s16, 1
      %s22 = ssub.s32 %s16, 2
      %s23 = sadd.s32 %s16, 1
      %s24 = ssub.s32 %s16, %s23
      %p25 = scmp.eq.s32.totalorder %s24, 0
      %s27 = sadd.s32 %s26, 1
      %s28 = scalar_select %p25, %s26, %s27
      %p31 = pneg %p25
      %p32 = scmp.eq.s32.totalorder %s16, 1
      %p33 = por %p31, %p32
      %p34 = scmp.ne.s32.totalorder %s26, %s29
      %p35 = scmp.eq.s32.totalorder %s16, 0
      %p36 = por %p34, %p35
      %p37 = scmp.ne.s32.totalorder %s26, %s29
      %p38 = scmp.eq.s32.totalorder %s21, 1
      %p39 = por %p37, %p38
      %p40 = scmp.ne.s32.totalorder %s29, %s30
      %p41 = scmp.eq.s32.totalorder %s21, 0
      %p42 = por %p40, %p41
      %p43 = scmp.ne.s32.totalorder %s29, %s30
      %p44 = scmp.eq.s32.totalorder %s22, 1
      %p45 = por %p43, %p44
      %p47 = scmp.ne.s32.totalorder %s30, %s46
      %p48 = scmp.eq.s32.totalorder %s22, 0
      %p49 = por %p47, %p48
      %s51 = sadd.s32 %s50, 1
      %p54 = scmp.eq.s32.totalorder %s16, 1
      %p55 = scmp.ne.s32.totalorder %s50, %s52
      %p56 = scmp.eq.s32.totalorder %s16, 0
      %p57 = por %p55, %p56
      %p58 = scmp.ne.s32.totalorder %s50, %s52
      %p59 = scmp.eq.s32.totalorder %s21, 1
      %p60 = por %p58, %p59
      %p61 = scmp.ne.s32.totalorder %s52, %s53
      %p62 = scmp.eq.s32.totalorder %s21, 0
      %p63 = por %p61, %p62
      %p64 = scmp.ne.s32.totalorder %s52, %s53
      %p65 = scmp.eq.s32.totalorder %s22, 1
      %p66 = por %p64, %p65
      %p68 = scmp.ne.s32.totalorder %s53, %s67
      %p69 = scmp.eq.s32.totalorder %s22, 0
      %p70 = por %p68, %p69
      %s72 = sadd.s32 %s71, 1
      %p75 = scmp.eq.s32.totalorder %s16, 1
      %p76 = scmp.ne.s32.totalorder %s71, %s73
      %p77 = scmp.eq.s32.totalorder %s16, 0
      %p78 = por %p76, %p77
      %p79 = scmp.ne.s32.totalorder %s71, %s73
      %p80 = scmp.eq.s32.totalorder %s21, 1
      %p81 = por %p79, %p80
      %p82 = scmp.ne.s32.totalorder %s73, %s74
      %p83 = scmp.eq.s32.totalorder %s21, 0
      %p84 = por %p82, %p83
      %p85 = scmp.ne.s32.totalorder %s73, %s74
      %p86 = scmp.eq.s32.totalorder %s22, 1
      %p87 = por %p85, %p86
      %p89 = scmp.ne.s32.totalorder %s74, %s88
      %p90 = scmp.eq.s32.totalorder %s22, 0
      %p91 = por %p89, %p90
      %s93 = sadd.s32 %s92, 1
      %p96 = scmp.eq.s32.totalorder %s16, 1
      %p97 = scmp.ne.s32.totalorder %s92, %s94
      %p98 = scmp.eq.s32.totalorder %s16, 0
      %p99 = por %p97, %p98
      %p100 = scmp.ne.s32.totalorder %s92, %s94
      %p101 = scmp.eq.s32.totalorder %s21, 1
      %p102 = por %p100, %p101
      %p103 = scmp.ne.s32.totalorder %s94, %s95
      %p104 = scmp.eq.s32.totalorder %s21, 0
      %p105 = por %p103, %p104
      %p106 = scmp.ne.s32.totalorder %s94, %s95
      %p107 = scmp.eq.s32.totalorder %s22, 1
      %p108 = por %p106, %p107
      %p110 = scmp.ne.s32.totalorder %s95, %s109
      %p111 = scmp.eq.s32.totalorder %s22, 0
      %p112 = por %p110, %p111
      %s114 = sadd.s32 %s113, 1
      %p117 = scmp.eq.s32.totalorder %s16, 1
      %p118 = scmp.ne.s32.totalorder %s113, %s115
      %p119 = scmp.eq.s32.totalorder %s16, 0
      %p120 = por %p118, %p119
      %p121 = scmp.ne.s32.totalorder %s113, %s115
      %p122 = scmp.eq.s32.totalorder %s21, 1
      %p123 = por %p121, %p122
      %p124 = scmp.ne.s32.totalorder %s115, %s116
      %p125 = scmp.eq.s32.totalorder %s21, 0
      %p126 = por %p124, %p125
      %p127 = scmp.ne.s32.totalorder %s115, %s116
      %p128 = scmp.eq.s32.totalorder %s22, 1
      %p129 = por %p127, %p128
      %p131 = scmp.ne.s32.totalorder %s116, %s130
      %p132 = scmp.eq.s32.totalorder %s22, 0
      %p133 = por %p131, %p132
      %s135 = sadd.s32 %s134, 1
      %p138 = scmp.eq.s32.totalorder %s16, 1
      %p139 = scmp.ne.s32.totalorder %s134, %s136
      %p140 = scmp.eq.s32.totalorder %s16, 0
      %p141 = por %p139, %p140
      %p142 = scmp.ne.s32.totalorder %s134, %s136
      %p143 = scmp.eq.s32.totalorder %s21, 1
      %p144 = por %p142, %p143
      %p145 = scmp.ne.s32.totalorder %s136, %s137
      %p146 = scmp.eq.s32.totalorder %s21, 0
      %p147 = por %p145, %p146
      %p148 = scmp.ne.s32.totalorder %s136, %s137
      %p149 = scmp.eq.s32.totalorder %s22, 1
      %p150 = por %p148, %p149
      %p152 = scmp.ne.s32.totalorder %s137, %s151
      %p153 = scmp.eq.s32.totalorder %s22, 0
      %p154 = por %p152, %p153
      %s156 = sadd.s32 %s155, 1
      %p159 = scmp.eq.s32.totalorder %s16, 1
      %p160 = scmp.ne.s32.totalorder %s155, %s157
      %p161 = scmp.eq.s32.totalorder %s16, 0
      %p162 = por %p160, %p161
      %p163 = scmp.ne.s32.totalorder %s155, %s157
      %p164 = scmp.eq.s32.totalorder %s21, 1
      %p165 = por %p163, %p164
      %p166 = scmp.ne.s32.totalorder %s157, %s158
      %p167 = scmp.eq.s32.totalorder %s21, 0
      %p168 = por %p166, %p167
      %p169 = scmp.ne.s32.totalorder %s157, %s158
      %p170 = scmp.eq.s32.totalorder %s22, 1
      %p171 = por %p169, %p170
      %p173 = scmp.ne.s32.totalorder %s158, %s172
      %p174 = scmp.eq.s32.totalorder %s22, 0
      %p175 = por %p173, %p174
      %s176 = ssub.s32 %s16, %s23
      %p177 = scmp.eq.s32.totalorder %s176, 0
      %s179 = sadd.s32 %s178, 1
      %s180 = scalar_select %p177, %s178, %s179
      %p183 = pneg %p177
      %p184 = scmp.eq.s32.totalorder %s16, 1
      %p185 = por %p183, %p184
      %p186 = scmp.ne.s32.totalorder %s178, %s181
      %p187 = scmp.eq.s32.totalorder %s16, 0
      %p188 = por %p186, %p187
      %p189 = scmp.ne.s32.totalorder %s178, %s181
      %p190 = scmp.eq.s32.totalorder %s21, 1
      %p191 = por %p189, %p190
      %p192 = scmp.ne.s32.totalorder %s181, %s182
      %p193 = scmp.eq.s32.totalorder %s21, 0
      %p194 = por %p192, %p193
      %p195 = scmp.ne.s32.totalorder %s181, %s182
      %p196 = scmp.eq.s32.totalorder %s22, 1
      %p197 = por %p195, %p196
      %p199 = scmp.ne.s32.totalorder %s182, %s198
      %p200 = scmp.eq.s32.totalorder %s22, 0
      %p201 = por %p199, %p200
      %p202 = scmp.le.s32.totalorder 1, %s16
      %p203 = scmp.lt.s32.totalorder %s16, 3
      %p204 = pnand %p202, %p203
      %p205 = pneg %p204
      // Predicated region
      $region9: #{tpu_custom_call.1} parent=5 // pred_check
        _
      $region10: #{tpu_custom_call.1} parent=5 // pred_check_branch
        %207 = sbr.rel (%p204) target = $region12
      $region11: #{tpu_custom_call.1} parent=5 // pred_region
        %s208 = ssub.s32 %s16, 1
        // Predicated region
        $region13: #{tpu_custom_call.1} parent=11 // pred_check
          %p209 = pneg %p63
        $region14: #{tpu_custom_call.1} parent=11 // pred_check_branch
          %211 = sbr.rel (%p209) target = $region16
        $region15: #{tpu_custom_call.1} parent=11 // pred_region
          _
        $region16: #{tpu_custom_call.1} parent=11 // pred_fallthru
          _
        // Predicated region
        $region17: #{tpu_custom_call.1} parent=11 // pred_check
          %p212 = pneg %p84
        $region18: #{tpu_custom_call.1} parent=11 // pred_check_branch
          %214 = sbr.rel (%p212) target = $region20
        $region19: #{tpu_custom_call.1} parent=11 // pred_region
          _
        $region20: #{tpu_custom_call.1} parent=11 // pred_fallthru
          _
        // Predicated region
        $region21: #{tpu_custom_call.1} parent=11 // pred_check
          %p215 = pneg %p105
        $region22: #{tpu_custom_call.1} parent=11 // pred_check_branch
          %217 = sbr.rel (%p215) target = $region24
        $region23: #{tpu_custom_call.1} parent=11 // pred_region
          _
        $region24: #{tpu_custom_call.1} parent=11 // pred_fallthru
          _
        // Predicated region
        $region25: #{tpu_custom_call.1} parent=11 // pred_check
          %p218 = pneg %p126
        $region26: #{tpu_custom_call.1} parent=11 // pred_check_branch
          %220 = sbr.rel (%p218) target = $region28
        $region27: #{tpu_custom_call.1} parent=11 // pred_region
          _
        $region28: #{tpu_custom_call.1} parent=11 // pred_fallthru
          _
        // Predicated region
        $region29: #{tpu_custom_call.1} parent=11 // pred_check
          %p221 = pneg %p147
        $region30: #{tpu_custom_call.1} parent=11 // pred_check_branch
          %223 = sbr.rel (%p221) target = $region32
        $region31: #{tpu_custom_call.1} parent=11 // pred_region
          _
        $region32: #{tpu_custom_call.1} parent=11 // pred_fallthru
          _
        // Predicated region
        $region33: #{tpu_custom_call.1} parent=11 // pred_check
          %p224 = pneg %p168
        $region34: #{tpu_custom_call.1} parent=11 // pred_check_branch
          %226 = sbr.rel (%p224) target = $region36
        $region35: #{tpu_custom_call.1} parent=11 // pred_region
          _
        $region36: #{tpu_custom_call.1} parent=11 // pred_fallthru
          _
      $region12: #{tpu_custom_call.1} parent=5 // pred_fallthru
        _
      %p227 = scmp.lt.s32.totalorder %s16, 2
      // Predicated region
      $region37: #{tpu_custom_call.1} parent=5 // pred_check
        %p228 = pneg %p227
      $region38: #{tpu_custom_call.1} parent=5 // pred_check_branch
        %230 = sbr.rel (%p228) target = $region40
      $region39: #{tpu_custom_call.1} parent=5 // pred_region
        // Predicated region
        $region41: #{tpu_custom_call.1} parent=39 // pred_check
          %p231 = pneg %p36
        $region42: #{tpu_custom_call.1} parent=39 // pred_check_branch
          %233 = sbr.rel (%p231) target = $region44
        $region43: #{tpu_custom_call.1} parent=39 // pred_region
          %s234 = smul.u32 32, %s16
          %p235 = scmp.lt.s32.totalorder %s234, 63
          %s236 = scalar_select %p235, %s234, 63
          %s237 = smul.addr %s236, 8
          %s238 = scalar_lea.vmem %s0, %s237
          %s239 = smul.u32 32, %s16
        $region44: #{tpu_custom_call.1} parent=39 // pred_fallthru
          _
      $region40: #{tpu_custom_call.1} parent=5 // pred_fallthru
        _
      %p240 = scmp.le.s32.totalorder 1, %s16
      %p241 = scmp.lt.s32.totalorder %s16, 3
      %p242 = pnand %p240, %p241
      %p243 = pneg %p242
      // Predicated region
      $region45: #{tpu_custom_call.1} parent=5 // pred_check
        _
      $region46: #{tpu_custom_call.1} parent=5 // pred_check_branch
        %245 = sbr.rel (%p242) target = $region48
      $region47: #{tpu_custom_call.1} parent=5 // pred_region
        %s246 = ssub.s32 %s16, 1
        %s247 = smul.u32 32, %s21
        %p248 = scmp.lt.s32.totalorder %s247, 63
        %s249 = scalar_select %p248, %s247, 63
        %s250 = smul.addr %s249, 8
        %s251 = scalar_lea.vmem %s0, %s250
        %p252 = pneg %p42
        %p253 = pneg %p39
        %p254 = pneg %p63
        %p255 = pneg %p60
        %p256 = pneg %p84
        %p257 = pneg %p81
        %p258 = pneg %p105
        %p259 = pneg %p102
        %p260 = pneg %p126
        %p261 = pneg %p123
        %p262 = pneg %p147
        %p263 = pneg %p144
        %p264 = pneg %p168
        %p265 = pneg %p165
        %p266 = pneg %p194
        %p267 = pneg %p191
        %s268 = sand.u32 %s181, 1
        %s269 = scalar_lea.sflag [#allocation3], %s268
        %s270 = sand.u32 %s181, 1
        %s271 = smul.addr %s270, 256
        %s272 = scalar_lea.vmem [#allocation2], %s271
        %s273 = smul.u32 32, %s21
        %p274 = scmp.lt.s32.totalorder %s273, 63
        %s275 = scalar_select %p274, %s273, 63
        %s276 = smul.addr %s275, 8
        %s277 = scalar_lea.vmem %s0, %s276
        %s278 = smul.u32 32, %s21
        %s279 = smul.u32 32, %s21
        %v281 = vld [vmem:[%s277] sm:$0xff]
        %v282 = vld [vmem:[%s277 + $0x8] sm:$0xff]
        %v283 = vld [vmem:[%s277 + $0x10] sm:$0xff]
        %v284 = vld [vmem:[%s277 + $0x18] sm:$0xff]
        %v285 = vld [vmem:[%s277 + $0x20] sm:$0xff]
        %v286 = vld [vmem:[%s277 + $0x28] sm:$0xff]
        %v287 = vld [vmem:[%s277 + $0x30] sm:$0xff]
        %v288 = vld [vmem:[%s277 + $0x38] sm:$0xff]
        %v289 = vld [vmem:[%s277 + $0x40] sm:$0xff]
        %v290 = vld [vmem:[%s277 + $0x48] sm:$0xff]
        %v291 = vld [vmem:[%s277 + $0x50] sm:$0xff]
        %v292 = vld [vmem:[%s277 + $0x58] sm:$0xff]
        %v293 = vld [vmem:[%s277 + $0x60] sm:$0xff]
        %v294 = vld [vmem:[%s277 + $0x68] sm:$0xff]
        %v295 = vld [vmem:[%s277 + $0x70] sm:$0xff]
        %v296 = vld [vmem:[%s277 + $0x78] sm:$0xff]
        %v297 = vld [vmem:[%s277 + $0x80] sm:$0xff]
        %v298 = vld [vmem:[%s277 + $0x88] sm:$0xff]
        %v299 = vld [vmem:[%s277 + $0x90] sm:$0xff]
        %v300 = vld [vmem:[%s277 + $0x98] sm:$0xff]
        %v301 = vld [vmem:[%s277 + $0xa0] sm:$0xff]
        %v302 = vld [vmem:[%s277 + $0xa8] sm:$0xff]
        %v303 = vld [vmem:[%s277 + $0xb0] sm:$0xff]
        %v304 = vld [vmem:[%s277 + $0xb8] sm:$0xff]
        %v305 = vld [vmem:[%s277 + $0xc0] sm:$0xff]
        %v306 = vld [vmem:[%s277 + $0xc8] sm:$0xff]
        %v307 = vld [vmem:[%s277 + $0xd0] sm:$0xff]
        %v308 = vld [vmem:[%s277 + $0xd8] sm:$0xff]
        %v309 = vld [vmem:[%s277 + $0xe0] sm:$0xff]
        %v310 = vld [vmem:[%s277 + $0xe8] sm:$0xff]
        %v311 = vld [vmem:[%s277 + $0xf0] sm:$0xff]
        %v312 = vld [vmem:[%s277 + $0xf8] sm:$0xff]
        %v313 = vld [vmem:[%s1] sm:$0xf]
        %v314 = vld [vmem:[%s2] sm:$0x1]
        %316 = vset.pattern.permute.xlu0 0
        %317 = vperm.xlu0 %316, %v281
        %v318 = vpop.permute.xlu0 %317
        %321 = vset.pattern.permute.xlu0 0
        %322 = vperm.xlu0 %321, %v282
        %v323 = vpop.permute.xlu0 %322
        %326 = vset.pattern.permute.xlu0 0
        %327 = vperm.xlu0 %326, %v283
        %v328 = vpop.permute.xlu0 %327
        %331 = vset.pattern.permute.xlu0 0
        %332 = vperm.xlu0 %331, %v284
        %v333 = vpop.permute.xlu0 %332
        %336 = vset.pattern.permute.xlu0 0
        %337 = vperm.xlu0 %336, %v285
        %v338 = vpop.permute.xlu0 %337
        %341 = vset.pattern.permute.xlu0 0
        %342 = vperm.xlu0 %341, %v286
        %v343 = vpop.permute.xlu0 %342
        %346 = vset.pattern.permute.xlu0 0
        %347 = vperm.xlu0 %346, %v287
        %v348 = vpop.permute.xlu0 %347
        %351 = vset.pattern.permute.xlu0 0
        %352 = vperm.xlu0 %351, %v288
        %v353 = vpop.permute.xlu0 %352
        %356 = vset.pattern.permute.xlu0 0
        %357 = vperm.xlu0 %356, %v289
        %v358 = vpop.permute.xlu0 %357
        %361 = vset.pattern.permute.xlu0 0
        %362 = vperm.xlu0 %361, %v290
        %v363 = vpop.permute.xlu0 %362
        %366 = vset.pattern.permute.xlu0 0
        %367 = vperm.xlu0 %366, %v291
        %v368 = vpop.permute.xlu0 %367
        %371 = vset.pattern.permute.xlu0 0
        %372 = vperm.xlu0 %371, %v292
        %v373 = vpop.permute.xlu0 %372
        %376 = vset.pattern.permute.xlu0 0
        %377 = vperm.xlu0 %376, %v293
        %v378 = vpop.permute.xlu0 %377
        %381 = vset.pattern.permute.xlu0 0
        %382 = vperm.xlu0 %381, %v294
        %v383 = vpop.permute.xlu0 %382
        %386 = vset.pattern.permute.xlu0 0
        %387 = vperm.xlu0 %386, %v295
        %v388 = vpop.permute.xlu0 %387
        %391 = vset.pattern.permute.xlu0 0
        %392 = vperm.xlu0 %391, %v296
        %v393 = vpop.permute.xlu0 %392
        %396 = vset.pattern.permute.xlu0 0
        %397 = vperm.xlu0 %396, %v297
        %v398 = vpop.permute.xlu0 %397
        %401 = vset.pattern.permute.xlu0 0
        %402 = vperm.xlu0 %401, %v298
        %v403 = vpop.permute.xlu0 %402
        %406 = vset.pattern.permute.xlu0 0
        %407 = vperm.xlu0 %406, %v299
        %v408 = vpop.permute.xlu0 %407
        %411 = vset.pattern.permute.xlu0 0
        %412 = vperm.xlu0 %411, %v300
        %v413 = vpop.permute.xlu0 %412
        %416 = vset.pattern.permute.xlu0 0
        %417 = vperm.xlu0 %416, %v301
        %v418 = vpop.permute.xlu0 %417
        %421 = vset.pattern.permute.xlu0 0
        %422 = vperm.xlu0 %421, %v302
        %v423 = vpop.permute.xlu0 %422
        %426 = vset.pattern.permute.xlu0 0
        %427 = vperm.xlu0 %426, %v303
        %v428 = vpop.permute.xlu0 %427
        %431 = vset.pattern.permute.xlu0 0
        %432 = vperm.xlu0 %431, %v304
        %v433 = vpop.permute.xlu0 %432
        %436 = vset.pattern.permute.xlu0 0
        %437 = vperm.xlu0 %436, %v305
        %v438 = vpop.permute.xlu0 %437
        %441 = vset.pattern.permute.xlu0 0
        %442 = vperm.xlu0 %441, %v306
        %v443 = vpop.permute.xlu0 %442
        %446 = vset.pattern.permute.xlu0 0
        %447 = vperm.xlu0 %446, %v307
        %v448 = vpop.permute.xlu0 %447
        %451 = vset.pattern.permute.xlu0 0
        %452 = vperm.xlu0 %451, %v308
        %v453 = vpop.permute.xlu0 %452
        %456 = vset.pattern.permute.xlu0 0
        %457 = vperm.xlu0 %456, %v309
        %v458 = vpop.permute.xlu0 %457
        %461 = vset.pattern.permute.xlu0 0
        %462 = vperm.xlu0 %461, %v310
        %v463 = vpop.permute.xlu0 %462
        %466 = vset.pattern.permute.xlu0 0
        %467 = vperm.xlu0 %466, %v311
        %v468 = vpop.permute.xlu0 %467
        %471 = vset.pattern.permute.xlu0 0
        %472 = vperm.xlu0 %471, %v312
        %v473 = vpop.permute.xlu0 %472
        %v475 = vlaneseq
        %v476 = vshrl.u32 %v475, 7
        %v477 = vsub.s32 0, %v476
        %v478 = vrot.slane %v313, %v477
        %v479 = vmul.f32 %v318, %v478
        %v480 = vmul.f32 %v323, %v478
        %v481 = vmul.f32 %v328, %v478
        %v482 = vmul.f32 %v333, %v478
        %v483 = vmul.f32 %v338, %v478
        %v484 = vmul.f32 %v343, %v478
        %v485 = vmul.f32 %v348, %v478
        %v486 = vmul.f32 %v353, %v478
        %v487 = vmul.f32 %v358, %v478
        %v488 = vmul.f32 %v363, %v478
        %v489 = vmul.f32 %v368, %v478
        %v490 = vmul.f32 %v373, %v478
        %v491 = vmul.f32 %v378, %v478
        %v492 = vmul.f32 %v383, %v478
        %v493 = vmul.f32 %v388, %v478
        %v494 = vmul.f32 %v393, %v478
        %v495 = vmul.f32 %v398, %v478
        %v496 = vmul.f32 %v403, %v478
        %v497 = vmul.f32 %v408, %v478
        %v498 = vmul.f32 %v413, %v478
        %v499 = vmul.f32 %v418, %v478
        %v500 = vmul.f32 %v423, %v478
        %v501 = vmul.f32 %v428, %v478
        %v502 = vmul.f32 %v433, %v478
        %v503 = vmul.f32 %v438, %v478
        %v504 = vmul.f32 %v443, %v478
        %v505 = vmul.f32 %v448, %v478
        %v506 = vmul.f32 %v453, %v478
        %v507 = vmul.f32 %v458, %v478
        %v508 = vmul.f32 %v463, %v478
        %v509 = vmul.f32 %v468, %v478
        %v510 = vmul.f32 %v473, %v478
        %v512 = vlaneseq
        %v513 = vshrl.u32 %v512, 7
        %v514 = vsub.s32 0, %v513
        %v515 = vrot.slane %v314, %v514
        %v517 = vadd.f32 %v515, %v479
        %v518 = vadd.f32 %v515, %v480
        %v519 = vadd.f32 %v515, %v481
        %v520 = vadd.f32 %v515, %v482
        %v521 = vadd.f32 %v515, %v483
        %v522 = vadd.f32 %v515, %v484
        %v523 = vadd.f32 %v515, %v485
        %v524 = vadd.f32 %v515, %v486
        %v525 = vadd.f32 %v515, %v487
        %v526 = vadd.f32 %v515, %v488
        %v527 = vadd.f32 %v515, %v489
        %v528 = vadd.f32 %v515, %v490
        %v529 = vadd.f32 %v515, %v491
        %v530 = vadd.f32 %v515, %v492
        %v531 = vadd.f32 %v515, %v493
        %v532 = vadd.f32 %v515, %v494
        %v533 = vadd.f32 %v515, %v495
        %v534 = vadd.f32 %v515, %v496
        %v535 = vadd.f32 %v515, %v497
        %v536 = vadd.f32 %v515, %v498
        %v537 = vadd.f32 %v515, %v499
        %v538 = vadd.f32 %v515, %v500
        %v539 = vadd.f32 %v515, %v501
        %v540 = vadd.f32 %v515, %v502
        %v541 = vadd.f32 %v515, %v503
        %v542 = vadd.f32 %v515, %v504
        %v543 = vadd.f32 %v515, %v505
        %v544 = vadd.f32 %v515, %v506
        %v545 = vadd.f32 %v515, %v507
        %v546 = vadd.f32 %v515, %v508
        %v547 = vadd.f32 %v515, %v509
        %v548 = vadd.f32 %v515, %v510
        %549 = vset.pattern.permute.xlu0 1
        %550 = vperm.xlu0 %549, %v281
        %v551 = vpop.permute.xlu0 %550
        %553 = vset.pattern.permute.xlu0 1
        %554 = vperm.xlu0 %553, %v282
        %v555 = vpop.permute.xlu0 %554
        %557 = vset.pattern.permute.xlu0 1
        %558 = vperm.xlu0 %557, %v283
        %v559 = vpop.permute.xlu0 %558
        %561 = vset.pattern.permute.xlu0 1
        %562 = vperm.xlu0 %561, %v284
        %v563 = vpop.permute.xlu0 %562
        %565 = vset.pattern.permute.xlu0 1
        %566 = vperm.xlu0 %565, %v285
        %v567 = vpop.permute.xlu0 %566
        %569 = vset.pattern.permute.xlu0 1
        %570 = vperm.xlu0 %569, %v286
        %v571 = vpop.permute.xlu0 %570
        %573 = vset.pattern.permute.xlu0 1
        %574 = vperm.xlu0 %573, %v287
        %v575 = vpop.permute.xlu0 %574
        %577 = vset.pattern.permute.xlu0 1
        %578 = vperm.xlu0 %577, %v288
        %v579 = vpop.permute.xlu0 %578
        %581 = vset.pattern.permute.xlu0 1
        %582 = vperm.xlu0 %581, %v289
        %v583 = vpop.permute.xlu0 %582
        %585 = vset.pattern.permute.xlu0 1
        %586 = vperm.xlu0 %585, %v290
        %v587 = vpop.permute.xlu0 %586
        %589 = vset.pattern.permute.xlu0 1
        %590 = vperm.xlu0 %589, %v291
        %v591 = vpop.permute.xlu0 %590
        %593 = vset.pattern.permute.xlu0 1
        %594 = vperm.xlu0 %593, %v292
        %v595 = vpop.permute.xlu0 %594
        %597 = vset.pattern.permute.xlu0 1
        %598 = vperm.xlu0 %597, %v293
        %v599 = vpop.permute.xlu0 %598
        %601 = vset.pattern.permute.xlu0 1
        %602 = vperm.xlu0 %601, %v294
        %v603 = vpop.permute.xlu0 %602
        %605 = vset.pattern.permute.xlu0 1
        %606 = vperm.xlu0 %605, %v295
        %v607 = vpop.permute.xlu0 %606
        %609 = vset.pattern.permute.xlu0 1
        %610 = vperm.xlu0 %609, %v296
        %v611 = vpop.permute.xlu0 %610
        %613 = vset.pattern.permute.xlu0 1
        %614 = vperm.xlu0 %613, %v297
        %v615 = vpop.permute.xlu0 %614
        %617 = vset.pattern.permute.xlu0 1
        %618 = vperm.xlu0 %617, %v298
        %v619 = vpop.permute.xlu0 %618
        %621 = vset.pattern.permute.xlu0 1
        %622 = vperm.xlu0 %621, %v299
        %v623 = vpop.permute.xlu0 %622
        %625 = vset.pattern.permute.xlu0 1
        %626 = vperm.xlu0 %625, %v300
        %v627 = vpop.permute.xlu0 %626
        %629 = vset.pattern.permute.xlu0 1
        %630 = vperm.xlu0 %629, %v301
        %v631 = vpop.permute.xlu0 %630
        %633 = vset.pattern.permute.xlu0 1
        %634 = vperm.xlu0 %633, %v302
        %v635 = vpop.permute.xlu0 %634
        %637 = vset.pattern.permute.xlu0 1
        %638 = vperm.xlu0 %637, %v303
        %v639 = vpop.permute.xlu0 %638
        %641 = vset.pattern.permute.xlu0 1
        %642 = vperm.xlu0 %641, %v304
        %v643 = vpop.permute.xlu0 %642
        %645 = vset.pattern.permute.xlu0 1
        %646 = vperm.xlu0 %645, %v305
        %v647 = vpop.permute.xlu0 %646
        %649 = vset.pattern.permute.xlu0 1
        %650 = vperm.xlu0 %649, %v306
        %v651 = vpop.permute.xlu0 %650
        %653 = vset.pattern.permute.xlu0 1
        %654 = vperm.xlu0 %653, %v307
        %v655 = vpop.permute.xlu0 %654
        %657 = vset.pattern.permute.xlu0 1
        %658 = vperm.xlu0 %657, %v308
        %v659 = vpop.permute.xlu0 %658
        %661 = vset.pattern.permute.xlu0 1
        %662 = vperm.xlu0 %661, %v309
        %v663 = vpop.permute.xlu0 %662
        %665 = vset.pattern.permute.xlu0 1
        %666 = vperm.xlu0 %665, %v310
        %v667 = vpop.permute.xlu0 %666
        %669 = vset.pattern.permute.xlu0 1
        %670 = vperm.xlu0 %669, %v311
        %v671 = vpop.permute.xlu0 %670
        %673 = vset.pattern.permute.xlu0 1
        %674 = vperm.xlu0 %673, %v312
        %v675 = vpop.permute.xlu0 %674
        %v677 = vlaneseq
        %v678 = vshrl.u32 %v677, 7
        %v679 = vsub.s32 1, %v678
        %v680 = vrot.slane %v313, %v679
        %v681 = vmul.f32 %v551, %v680
        %v682 = vmul.f32 %v555, %v680
        %v683 = vmul.f32 %v559, %v680
        %v684 = vmul.f32 %v563, %v680
        %v685 = vmul.f32 %v567, %v680
        %v686 = vmul.f32 %v571, %v680
        %v687 = vmul.f32 %v575, %v680
        %v688 = vmul.f32 %v579, %v680
        %v689 = vmul.f32 %v583, %v680
        %v690 = vmul.f32 %v587, %v680
        %v691 = vmul.f32 %v591, %v680
        %v692 = vmul.f32 %v595, %v680
        %v693 = vmul.f32 %v599, %v680
        %v694 = vmul.f32 %v603, %v680
        %v695 = vmul.f32 %v607, %v680
        %v696 = vmul.f32 %v611, %v680
        %v697 = vmul.f32 %v615, %v680
        %v698 = vmul.f32 %v619, %v680
        %v699 = vmul.f32 %v623, %v680
        %v700 = vmul.f32 %v627, %v680
        %v701 = vmul.f32 %v631, %v680
        %v702 = vmul.f32 %v635, %v680
        %v703 = vmul.f32 %v639, %v680
        %v704 = vmul.f32 %v643, %v680
        %v705 = vmul.f32 %v647, %v680
        %v706 = vmul.f32 %v651, %v680
        %v707 = vmul.f32 %v655, %v680
        %v708 = vmul.f32 %v659, %v680
        %v709 = vmul.f32 %v663, %v680
        %v710 = vmul.f32 %v667, %v680
        %v711 = vmul.f32 %v671, %v680
        %v712 = vmul.f32 %v675, %v680
        %v713 = vadd.f32 %v517, %v681
        %v714 = vadd.f32 %v518, %v682
        %v715 = vadd.f32 %v519, %v683
        %v716 = vadd.f32 %v520, %v684
        %v717 = vadd.f32 %v521, %v685
        %v718 = vadd.f32 %v522, %v686
        %v719 = vadd.f32 %v523, %v687
        %v720 = vadd.f32 %v524, %v688
        %v721 = vadd.f32 %v525, %v689
        %v722 = vadd.f32 %v526, %v690
        %v723 = vadd.f32 %v527, %v691
        %v724 = vadd.f32 %v528, %v692
        %v725 = vadd.f32 %v529, %v693
        %v726 = vadd.f32 %v530, %v694
        %v727 = vadd.f32 %v531, %v695
        %v728 = vadd.f32 %v532, %v696
        %v729 = vadd.f32 %v533, %v697
        %v730 = vadd.f32 %v534, %v698
        %v731 = vadd.f32 %v535, %v699
        %v732 = vadd.f32 %v536, %v700
        %v733 = vadd.f32 %v537, %v701
        %v734 = vadd.f32 %v538, %v702
        %v735 = vadd.f32 %v539, %v703
        %v736 = vadd.f32 %v540, %v704
        %v737 = vadd.f32 %v541, %v705
        %v738 = vadd.f32 %v542, %v706
        %v739 = vadd.f32 %v543, %v707
        %v740 = vadd.f32 %v544, %v708
        %v741 = vadd.f32 %v545, %v709
        %v742 = vadd.f32 %v546, %v710
        %v743 = vadd.f32 %v547, %v711
        %v744 = vadd.f32 %v548, %v712
        %745 = vset.pattern.permute.xlu0 2
        %746 = vperm.xlu0 %745, %v281
        %v747 = vpop.permute.xlu0 %746
        %749 = vset.pattern.permute.xlu0 2
        %750 = vperm.xlu0 %749, %v282
        %v751 = vpop.permute.xlu0 %750
        %753 = vset.pattern.permute.xlu0 2
        %754 = vperm.xlu0 %753, %v283
        %v755 = vpop.permute.xlu0 %754
        %757 = vset.pattern.permute.xlu0 2
        %758 = vperm.xlu0 %757, %v284
        %v759 = vpop.permute.xlu0 %758
        %761 = vset.pattern.permute.xlu0 2
        %762 = vperm.xlu0 %761, %v285
        %v763 = vpop.permute.xlu0 %762
        %765 = vset.pattern.permute.xlu0 2
        %766 = vperm.xlu0 %765, %v286
        %v767 = vpop.permute.xlu0 %766
        %769 = vset.pattern.permute.xlu0 2
        %770 = vperm.xlu0 %769, %v287
        %v771 = vpop.permute.xlu0 %770
        %773 = vset.pattern.permute.xlu0 2
        %774 = vperm.xlu0 %773, %v288
        %v775 = vpop.permute.xlu0 %774
        %777 = vset.pattern.permute.xlu0 2
        %778 = vperm.xlu0 %777, %v289
        %v779 = vpop.permute.xlu0 %778
        %781 = vset.pattern.permute.xlu0 2
        %782 = vperm.xlu0 %781, %v290
        %v783 = vpop.permute.xlu0 %782
        %785 = vset.pattern.permute.xlu0 2
        %786 = vperm.xlu0 %785, %v291
        %v787 = vpop.permute.xlu0 %786
        %789 = vset.pattern.permute.xlu0 2
        %790 = vperm.xlu0 %789, %v292
        %v791 = vpop.permute.xlu0 %790
        %793 = vset.pattern.permute.xlu0 2
        %794 = vperm.xlu0 %793, %v293
        %v795 = vpop.permute.xlu0 %794
        %797 = vset.pattern.permute.xlu0 2
        %798 = vperm.xlu0 %797, %v294
        %v799 = vpop.permute.xlu0 %798
        %801 = vset.pattern.permute.xlu0 2
        %802 = vperm.xlu0 %801, %v295
        %v803 = vpop.permute.xlu0 %802
        %805 = vset.pattern.permute.xlu0 2
        %806 = vperm.xlu0 %805, %v296
        %v807 = vpop.permute.xlu0 %806
        %809 = vset.pattern.permute.xlu0 2
        %810 = vperm.xlu0 %809, %v297
        %v811 = vpop.permute.xlu0 %810
        %813 = vset.pattern.permute.xlu0 2
        %814 = vperm.xlu0 %813, %v298
        %v815 = vpop.permute.xlu0 %814
        %817 = vset.pattern.permute.xlu0 2
        %818 = vperm.xlu0 %817, %v299
        %v819 = vpop.permute.xlu0 %818
        %821 = vset.pattern.permute.xlu0 2
        %822 = vperm.xlu0 %821, %v300
        %v823 = vpop.permute.xlu0 %822
        %825 = vset.pattern.permute.xlu0 2
        %826 = vperm.xlu0 %825, %v301
        %v827 = vpop.permute.xlu0 %826
        %829 = vset.pattern.permute.xlu0 2
        %830 = vperm.xlu0 %829, %v302
        %v831 = vpop.permute.xlu0 %830
        %833 = vset.pattern.permute.xlu0 2
        %834 = vperm.xlu0 %833, %v303
        %v835 = vpop.permute.xlu0 %834
        %837 = vset.pattern.permute.xlu0 2
        %838 = vperm.xlu0 %837, %v304
        %v839 = vpop.permute.xlu0 %838
        %841 = vset.pattern.permute.xlu0 2
        %842 = vperm.xlu0 %841, %v305
        %v843 = vpop.permute.xlu0 %842
        %845 = vset.pattern.permute.xlu0 2
        %846 = vperm.xlu0 %845, %v306
        %v847 = vpop.permute.xlu0 %846
        %849 = vset.pattern.permute.xlu0 2
        %850 = vperm.xlu0 %849, %v307
        %v851 = vpop.permute.xlu0 %850
        %853 = vset.pattern.permute.xlu0 2
        %854 = vperm.xlu0 %853, %v308
        %v855 = vpop.permute.xlu0 %854
        %857 = vset.pattern.permute.xlu0 2
        %858 = vperm.xlu0 %857, %v309
        %v859 = vpop.permute.xlu0 %858
        %861 = vset.pattern.permute.xlu0 2
        %862 = vperm.xlu0 %861, %v310
        %v863 = vpop.permute.xlu0 %862
        %865 = vset.pattern.permute.xlu0 2
        %866 = vperm.xlu0 %865, %v311
        %v867 = vpop.permute.xlu0 %866
        %869 = vset.pattern.permute.xlu0 2
        %870 = vperm.xlu0 %869, %v312
        %v871 = vpop.permute.xlu0 %870
        %v873 = vlaneseq
        %v874 = vshrl.u32 %v873, 7
        %v875 = vsub.s32 2, %v874
        %v876 = vrot.slane %v313, %v875
        %v877 = vmul.f32 %v747, %v876
        %v878 = vmul.f32 %v751, %v876
        %v879 = vmul.f32 %v755, %v876
        %v880 = vmul.f32 %v759, %v876
        %v881 = vmul.f32 %v763, %v876
        %v882 = vmul.f32 %v767, %v876
        %v883 = vmul.f32 %v771, %v876
        %v884 = vmul.f32 %v775, %v876
        %v885 = vmul.f32 %v779, %v876
        %v886 = vmul.f32 %v783, %v876
        %v887 = vmul.f32 %v787, %v876
        %v888 = vmul.f32 %v791, %v876
        %v889 = vmul.f32 %v795, %v876
        %v890 = vmul.f32 %v799, %v876
        %v891 = vmul.f32 %v803, %v876
        %v892 = vmul.f32 %v807, %v876
        %v893 = vmul.f32 %v811, %v876
        %v894 = vmul.f32 %v815, %v876
        %v895 = vmul.f32 %v819, %v876
        %v896 = vmul.f32 %v823, %v876
        %v897 = vmul.f32 %v827, %v876
        %v898 = vmul.f32 %v831, %v876
        %v899 = vmul.f32 %v835, %v876
        %v900 = vmul.f32 %v839, %v876
        %v901 = vmul.f32 %v843, %v876
        %v902 = vmul.f32 %v847, %v876
        %v903 = vmul.f32 %v851, %v876
        %v904 = vmul.f32 %v855, %v876
        %v905 = vmul.f32 %v859, %v876
        %v906 = vmul.f32 %v863, %v876
        %v907 = vmul.f32 %v867, %v876
        %v908 = vmul.f32 %v871, %v876
        %v909 = vadd.f32 %v713, %v877
        %v910 = vadd.f32 %v714, %v878
        %v911 = vadd.f32 %v715, %v879
        %v912 = vadd.f32 %v716, %v880
        %v913 = vadd.f32 %v717, %v881
        %v914 = vadd.f32 %v718, %v882
        %v915 = vadd.f32 %v719, %v883
        %v916 = vadd.f32 %v720, %v884
        %v917 = vadd.f32 %v721, %v885
        %v918 = vadd.f32 %v722, %v886
        %v919 = vadd.f32 %v723, %v887
        %v920 = vadd.f32 %v724, %v888
        %v921 = vadd.f32 %v725, %v889
        %v922 = vadd.f32 %v726, %v890
        %v923 = vadd.f32 %v727, %v891
        %v924 = vadd.f32 %v728, %v892
        %v925 = vadd.f32 %v729, %v893
        %v926 = vadd.f32 %v730, %v894
        %v927 = vadd.f32 %v731, %v895
        %v928 = vadd.f32 %v732, %v896
        %v929 = vadd.f32 %v733, %v897
        %v930 = vadd.f32 %v734, %v898
        %v931 = vadd.f32 %v735, %v899
        %v932 = vadd.f32 %v736, %v900
        %v933 = vadd.f32 %v737, %v901
        %v934 = vadd.f32 %v738, %v902
        %v935 = vadd.f32 %v739, %v903
        %v936 = vadd.f32 %v740, %v904
        %v937 = vadd.f32 %v741, %v905
        %v938 = vadd.f32 %v742, %v906
        %v939 = vadd.f32 %v743, %v907
        %v940 = vadd.f32 %v744, %v908
        %941 = vset.pattern.permute.xlu0 3
        %942 = vperm.xlu0 %941, %v281
        %v943 = vpop.permute.xlu0 %942
        %945 = vset.pattern.permute.xlu0 3
        %946 = vperm.xlu0 %945, %v282
        %v947 = vpop.permute.xlu0 %946
        %949 = vset.pattern.permute.xlu0 3
        %950 = vperm.xlu0 %949, %v283
        %v951 = vpop.permute.xlu0 %950
        %953 = vset.pattern.permute.xlu0 3
        %954 = vperm.xlu0 %953, %v284
        %v955 = vpop.permute.xlu0 %954
        %957 = vset.pattern.permute.xlu0 3
        %958 = vperm.xlu0 %957, %v285
        %v959 = vpop.permute.xlu0 %958
        %961 = vset.pattern.permute.xlu0 3
        %962 = vperm.xlu0 %961, %v286
        %v963 = vpop.permute.xlu0 %962
        %965 = vset.pattern.permute.xlu0 3
        %966 = vperm.xlu0 %965, %v287
        %v967 = vpop.permute.xlu0 %966
        %969 = vset.pattern.permute.xlu0 3
        %970 = vperm.xlu0 %969, %v288
        %v971 = vpop.permute.xlu0 %970
        %973 = vset.pattern.permute.xlu0 3
        %974 = vperm.xlu0 %973, %v289
        %v975 = vpop.permute.xlu0 %974
        %977 = vset.pattern.permute.xlu0 3
        %978 = vperm.xlu0 %977, %v290
        %v979 = vpop.permute.xlu0 %978
        %981 = vset.pattern.permute.xlu0 3
        %982 = vperm.xlu0 %981, %v291
        %v983 = vpop.permute.xlu0 %982
        %985 = vset.pattern.permute.xlu0 3
        %986 = vperm.xlu0 %985, %v292
        %v987 = vpop.permute.xlu0 %986
        %989 = vset.pattern.permute.xlu0 3
        %990 = vperm.xlu0 %989, %v293
        %v991 = vpop.permute.xlu0 %990
        %993 = vset.pattern.permute.xlu0 3
        %994 = vperm.xlu0 %993, %v294
        %v995 = vpop.permute.xlu0 %994
        %997 = vset.pattern.permute.xlu0 3
        %998 = vperm.xlu0 %997, %v295
        %v999 = vpop.permute.xlu0 %998
        %1001 = vset.pattern.permute.xlu0 3
        %1002 = vperm.xlu0 %1001, %v296
        %v1003 = vpop.permute.xlu0 %1002
        %1005 = vset.pattern.permute.xlu0 3
        %1006 = vperm.xlu0 %1005, %v297
        %v1007 = vpop.permute.xlu0 %1006
        %1009 = vset.pattern.permute.xlu0 3
        %1010 = vperm.xlu0 %1009, %v298
        %v1011 = vpop.permute.xlu0 %1010
        %1013 = vset.pattern.permute.xlu0 3
        %1014 = vperm.xlu0 %1013, %v299
        %v1015 = vpop.permute.xlu0 %1014
        %1017 = vset.pattern.permute.xlu0 3
        %1018 = vperm.xlu0 %1017, %v300
        %v1019 = vpop.permute.xlu0 %1018
        %1021 = vset.pattern.permute.xlu0 3
        %1022 = vperm.xlu0 %1021, %v301
        %v1023 = vpop.permute.xlu0 %1022
        %1025 = vset.pattern.permute.xlu0 3
        %1026 = vperm.xlu0 %1025, %v302
        %v1027 = vpop.permute.xlu0 %1026
        %1029 = vset.pattern.permute.xlu0 3
        %1030 = vperm.xlu0 %1029, %v303
        %v1031 = vpop.permute.xlu0 %1030
        %1033 = vset.pattern.permute.xlu0 3
        %1034 = vperm.xlu0 %1033, %v304
        %v1035 = vpop.permute.xlu0 %1034
        %1037 = vset.pattern.permute.xlu0 3
        %1038 = vperm.xlu0 %1037, %v305
        %v1039 = vpop.permute.xlu0 %1038
        %1041 = vset.pattern.permute.xlu0 3
        %1042 = vperm.xlu0 %1041, %v306
        %v1043 = vpop.permute.xlu0 %1042
        %1045 = vset.pattern.permute.xlu0 3
        %1046 = vperm.xlu0 %1045, %v307
        %v1047 = vpop.permute.xlu0 %1046
        %1049 = vset.pattern.permute.xlu0 3
        %1050 = vperm.xlu0 %1049, %v308
        %v1051 = vpop.permute.xlu0 %1050
        %1053 = vset.pattern.permute.xlu0 3
        %1054 = vperm.xlu0 %1053, %v309
        %v1055 = vpop.permute.xlu0 %1054
        %1057 = vset.pattern.permute.xlu0 3
        %1058 = vperm.xlu0 %1057, %v310
        %v1059 = vpop.permute.xlu0 %1058
        %1061 = vset.pattern.permute.xlu0 3
        %1062 = vperm.xlu0 %1061, %v311
        %v1063 = vpop.permute.xlu0 %1062
        %1065 = vset.pattern.permute.xlu0 3
        %1066 = vperm.xlu0 %1065, %v312
        %v1067 = vpop.permute.xlu0 %1066
        %v1069 = vlaneseq
        %v1070 = vshrl.u32 %v1069, 7
        %v1071 = vsub.s32 3, %v1070
        %v1072 = vrot.slane %v313, %v1071
        %v1073 = vmul.f32 %v943, %v1072
        %v1074 = vmul.f32 %v947, %v1072
        %v1075 = vmul.f32 %v951, %v1072
        %v1076 = vmul.f32 %v955, %v1072
        %v1077 = vmul.f32 %v959, %v1072
        %v1078 = vmul.f32 %v963, %v1072
        %v1079 = vmul.f32 %v967, %v1072
        %v1080 = vmul.f32 %v971, %v1072
        %v1081 = vmul.f32 %v975, %v1072
        %v1082 = vmul.f32 %v979, %v1072
        %v1083 = vmul.f32 %v983, %v1072
        %v1084 = vmul.f32 %v987, %v1072
        %v1085 = vmul.f32 %v991, %v1072
        %v1086 = vmul.f32 %v995, %v1072
        %v1087 = vmul.f32 %v999, %v1072
        %v1088 = vmul.f32 %v1003, %v1072
        %v1089 = vmul.f32 %v1007, %v1072
        %v1090 = vmul.f32 %v1011, %v1072
        %v1091 = vmul.f32 %v1015, %v1072
        %v1092 = vmul.f32 %v1019, %v1072
        %v1093 = vmul.f32 %v1023, %v1072
        %v1094 = vmul.f32 %v1027, %v1072
        %v1095 = vmul.f32 %v1031, %v1072
        %v1096 = vmul.f32 %v1035, %v1072
        %v1097 = vmul.f32 %v1039, %v1072
        %v1098 = vmul.f32 %v1043, %v1072
        %v1099 = vmul.f32 %v1047, %v1072
        %v1100 = vmul.f32 %v1051, %v1072
        %v1101 = vmul.f32 %v1055, %v1072
        %v1102 = vmul.f32 %v1059, %v1072
        %v1103 = vmul.f32 %v1063, %v1072
        %v1104 = vmul.f32 %v1067, %v1072
        %v1105 = vadd.f32 %v909, %v1073
        %v1106 = vadd.f32 %v910, %v1074
        %v1107 = vadd.f32 %v911, %v1075
        %v1108 = vadd.f32 %v912, %v1076
        %v1109 = vadd.f32 %v913, %v1077
        %v1110 = vadd.f32 %v914, %v1078
        %v1111 = vadd.f32 %v915, %v1079
        %v1112 = vadd.f32 %v916, %v1080
        %v1113 = vadd.f32 %v917, %v1081
        %v1114 = vadd.f32 %v918, %v1082
        %v1115 = vadd.f32 %v919, %v1083
        %v1116 = vadd.f32 %v920, %v1084
        %v1117 = vadd.f32 %v921, %v1085
        %v1118 = vadd.f32 %v922, %v1086
        %v1119 = vadd.f32 %v923, %v1087
        %v1120 = vadd.f32 %v924, %v1088
        %v1121 = vadd.f32 %v925, %v1089
        %v1122 = vadd.f32 %v926, %v1090
        %v1123 = vadd.f32 %v927, %v1091
        %v1124 = vadd.f32 %v928, %v1092
        %v1125 = vadd.f32 %v929, %v1093
        %v1126 = vadd.f32 %v930, %v1094
        %v1127 = vadd.f32 %v931, %v1095
        %v1128 = vadd.f32 %v932, %v1096
        %v1129 = vadd.f32 %v933, %v1097
        %v1130 = vadd.f32 %v934, %v1098
        %v1131 = vadd.f32 %v935, %v1099
        %v1132 = vadd.f32 %v936, %v1100
        %v1133 = vadd.f32 %v937, %v1101
        %v1134 = vadd.f32 %v938, %v1102
        %v1135 = vadd.f32 %v939, %v1103
        %v1136 = vadd.f32 %v940, %v1104
        %v1137 = vmax.f32 %v1105, 0.0
        %v1138 = vmax.f32 %v1106, 0.0
        %v1139 = vmax.f32 %v1107, 0.0
        %v1140 = vmax.f32 %v1108, 0.0
        %v1141 = vmax.f32 %v1109, 0.0
        %v1142 = vmax.f32 %v1110, 0.0
        %v1143 = vmax.f32 %v1111, 0.0
        %v1144 = vmax.f32 %v1112, 0.0
        %v1145 = vmax.f32 %v1113, 0.0
        %v1146 = vmax.f32 %v1114, 0.0
        %v1147 = vmax.f32 %v1115, 0.0
        %v1148 = vmax.f32 %v1116, 0.0
        %v1149 = vmax.f32 %v1117, 0.0
        %v1150 = vmax.f32 %v1118, 0.0
        %v1151 = vmax.f32 %v1119, 0.0
        %v1152 = vmax.f32 %v1120, 0.0
        %v1153 = vmax.f32 %v1121, 0.0
        %v1154 = vmax.f32 %v1122, 0.0
        %v1155 = vmax.f32 %v1123, 0.0
        %v1156 = vmax.f32 %v1124, 0.0
        %v1157 = vmax.f32 %v1125, 0.0
        %v1158 = vmax.f32 %v1126, 0.0
        %v1159 = vmax.f32 %v1127, 0.0
        %v1160 = vmax.f32 %v1128, 0.0
        %v1161 = vmax.f32 %v1129, 0.0
        %v1162 = vmax.f32 %v1130, 0.0
        %v1163 = vmax.f32 %v1131, 0.0
        %v1164 = vmax.f32 %v1132, 0.0
        %v1165 = vmax.f32 %v1133, 0.0
        %v1166 = vmax.f32 %v1134, 0.0
        %v1167 = vmax.f32 %v1135, 0.0
        %v1168 = vmax.f32 %v1136, 0.0
        %v1169 = vpack.c.bf16 %v1138, %v1137
        %v1170 = vpack.c.bf16 %v1140, %v1139
        %v1171 = vpack.c.bf16 %v1142, %v1141
        %v1172 = vpack.c.bf16 %v1144, %v1143
        %v1173 = vpack.c.bf16 %v1146, %v1145
        %v1174 = vpack.c.bf16 %v1148, %v1147
        %v1175 = vpack.c.bf16 %v1150, %v1149
        %v1176 = vpack.c.bf16 %v1152, %v1151
        %v1177 = vpack.c.bf16 %v1154, %v1153
        %v1178 = vpack.c.bf16 %v1156, %v1155
        %v1179 = vpack.c.bf16 %v1158, %v1157
        %v1180 = vpack.c.bf16 %v1160, %v1159
        %v1181 = vpack.c.bf16 %v1162, %v1161
        %v1182 = vpack.c.bf16 %v1164, %v1163
        %v1183 = vpack.c.bf16 %v1166, %v1165
        %v1184 = vpack.c.bf16 %v1168, %v1167
        %v1185 = vld [vmem:[%s3] sm:$0xf]
        %v1186 = vld [vmem:[%s3 + $0x4] sm:$0xf]
        %v1187 = vld [vmem:[%s3 + $0x8] sm:$0xf]
        %v1188 = vld [vmem:[%s3 + $0xc] sm:$0xf]
        %v1189 = vld [vmem:[%s3 + $0x10] sm:$0xf]
        %v1190 = vld [vmem:[%s3 + $0x14] sm:$0xf]
        %v1191 = vld [vmem:[%s3 + $0x18] sm:$0xf]
        %v1192 = vld [vmem:[%s3 + $0x1c] sm:$0xf]
        %v1193 = vld [vmem:[%s3 + $0x20] sm:$0xf]
        %v1194 = vld [vmem:[%s3 + $0x24] sm:$0xf]
        %v1195 = vld [vmem:[%s3 + $0x28] sm:$0xf]
        %v1196 = vld [vmem:[%s3 + $0x2c] sm:$0xf]
        %v1197 = vld [vmem:[%s3 + $0x30] sm:$0xf]
        %v1198 = vld [vmem:[%s3 + $0x34] sm:$0xf]
        %v1199 = vld [vmem:[%s3 + $0x38] sm:$0xf]
        %v1200 = vld [vmem:[%s3 + $0x3c] sm:$0xf]
        %v1201 = vld [vmem:[%s4] sm:$0x1]
        %v1203 = vlaneseq
        %v1204 = vshrl.u32 %v1203, 7
        %v1205 = vsub.s32 0, %v1204
        %v1206 = vrot.slane %v1201, %v1205
        %v1224 = vunpack.c.l.b16 %v1185
        %v1225 = vunpack.c.l.b16 %v1186
        %v1226 = vunpack.c.l.b16 %v1187
        %v1227 = vunpack.c.l.b16 %v1188
        %v1228 = vunpack.c.l.b16 %v1189
        %v1229 = vunpack.c.l.b16 %v1190
        %v1230 = vunpack.c.l.b16 %v1191
        %v1231 = vunpack.c.l.b16 %v1192
        %v1232 = vunpack.c.l.b16 %v1193
        %v1233 = vunpack.c.l.b16 %v1194
        %v1234 = vunpack.c.l.b16 %v1195
        %v1235 = vunpack.c.l.b16 %v1196
        %v1236 = vunpack.c.l.b16 %v1197
        %v1237 = vunpack.c.l.b16 %v1198
        %v1238 = vunpack.c.l.b16 %v1199
        %v1239 = vunpack.c.l.b16 %v1200
        %v1240 = vpack.c.b16 %v1225, %v1224
        %v1241 = vpack.c.b16 %v1227, %v1226
        %v1242 = vpack.c.b16 %v1229, %v1228
        %v1243 = vpack.c.b16 %v1231, %v1230
        %v1244 = vpack.c.b16 %v1233, %v1232
        %v1245 = vpack.c.b16 %v1235, %v1234
        %v1246 = vpack.c.b16 %v1237, %v1236
        %v1247 = vpack.c.b16 %v1239, %v1238
        %1256 = vmatprep.subr.bf16.mxu0 0
        %1257 = vmatpush1.bf16.msra.mxu0 %v1247
        %1258 = vmatprep.subr.bf16.mxu0 0
        %1259 = vmatpush1.bf16.msra.mxu0 %v1246
        %1260 = vmatprep.subr.bf16.mxu0 0
        %1261 = vmatpush1.bf16.msra.mxu0 %v1245
        %1262 = vmatprep.subr.bf16.mxu0 0
        %1263 = vmatpush1.bf16.msra.mxu0 %v1244
        %1264 = vmatprep.subr.bf16.mxu0 0
        %1265 = vmatpush1.bf16.msra.mxu0 %v1243
        %1266 = vmatprep.subr.bf16.mxu0 0
        %1267 = vmatpush1.bf16.msra.mxu0 %v1242
        %1268 = vmatprep.subr.bf16.mxu0 0
        %1269 = vmatpush1.bf16.msra.mxu0 %v1241
        %1270 = vmatprep.subr.bf16.mxu0 0
        %1271 = vmatpush1.bf16.msra.mxu0 %v1240
        %1272 = vmatprep.subr.bf16.mxu0 0
        %1273 = vmatpush2.bf16.msra.mxu0 0
        %1274 = vmatprep.subr.bf16.mxu0 0
        %1275 = vmatpush2.bf16.msra.mxu0 0
        %1276 = vmatprep.subr.bf16.mxu0 0
        %1277 = vmatpush2.bf16.msra.mxu0 0
        %1278 = vmatprep.subr.bf16.mxu0 0
        %1279 = vmatpush2.bf16.msra.mxu0 0
        %1280 = vmatprep.subr.bf16.mxu0 0
        %1281 = vmatpush2.bf16.msra.mxu0 0
        %1282 = vmatprep.subr.bf16.mxu0 0
        %1283 = vmatpush2.bf16.msra.mxu0 0
        %1284 = vmatprep.subr.bf16.mxu0 0
        %1285 = vmatpush2.bf16.msra.mxu0 0
        %1286 = vmatprep.subr.bf16.mxu0 0
        %1287 = vmatpush2.bf16.msra.mxu0 0
        %1288 = vmatprep.mubr.bf16.mxu0 0
        %1289 = vmatmul.mubr.bf16.gmra.mxu0 %v1169
        %v1290 = vpop.f32.mrf.mxu0
        %v1291 = vadd.f32 %v1206, %v1290
        %v1292 = vpop.f32.mrf.mxu0
        %v1293 = vpop.f32.mrf.mxu0
        %v1294 = vadd.f32 %v1206, %v1293
        %v1295 = vpop.f32.mrf.mxu0
        %1296 = vmatprep.mubr.bf16.mxu0 0
        %1297 = vmatmul.mubr.bf16.gmra.mxu0 %v1170
        %v1298 = vpop.f32.mrf.mxu0
        %v1299 = vadd.f32 %v1206, %v1298
        %v1300 = vpop.f32.mrf.mxu0
        %v1301 = vpop.f32.mrf.mxu0
        %v1302 = vadd.f32 %v1206, %v1301
        %v1303 = vpop.f32.mrf.mxu0
        %1304 = vmatprep.mubr.bf16.mxu0 0
        %1305 = vmatmul.mubr.bf16.gmra.mxu0 %v1171
        %v1306 = vpop.f32.mrf.mxu0
        %v1307 = vadd.f32 %v1206, %v1306
        %v1308 = vpop.f32.mrf.mxu0
        %v1309 = vpop.f32.mrf.mxu0
        %v1310 = vadd.f32 %v1206, %v1309
        %v1311 = vpop.f32.mrf.mxu0
        %1312 = vmatprep.mubr.bf16.mxu0 0
        %1313 = vmatmul.mubr.bf16.gmra.mxu0 %v1172
        %v1314 = vpop.f32.mrf.mxu0
        %v1315 = vadd.f32 %v1206, %v1314
        %v1316 = vpop.f32.mrf.mxu0
        %v1317 = vpop.f32.mrf.mxu0
        %v1318 = vadd.f32 %v1206, %v1317
        %v1319 = vpop.f32.mrf.mxu0
        %1320 = vmatprep.mubr.bf16.mxu0 0
        %1321 = vmatmul.mubr.bf16.gmra.mxu0 %v1173
        %v1322 = vpop.f32.mrf.mxu0
        %v1323 = vadd.f32 %v1206, %v1322
        %v1324 = vpop.f32.mrf.mxu0
        %v1325 = vpop.f32.mrf.mxu0
        %v1326 = vadd.f32 %v1206, %v1325
        %v1327 = vpop.f32.mrf.mxu0
        %1328 = vmatprep.mubr.bf16.mxu0 0
        %1329 = vmatmul.mubr.bf16.gmra.mxu0 %v1174
        %v1330 = vpop.f32.mrf.mxu0
        %v1331 = vadd.f32 %v1206, %v1330
        %v1332 = vpop.f32.mrf.mxu0
        %v1333 = vpop.f32.mrf.mxu0
        %v1334 = vadd.f32 %v1206, %v1333
        %v1335 = vpop.f32.mrf.mxu0
        %1336 = vmatprep.mubr.bf16.mxu0 0
        %1337 = vmatmul.mubr.bf16.gmra.mxu0 %v1175
        %v1338 = vpop.f32.mrf.mxu0
        %v1339 = vadd.f32 %v1206, %v1338
        %v1340 = vpop.f32.mrf.mxu0
        %v1341 = vpop.f32.mrf.mxu0
        %v1342 = vadd.f32 %v1206, %v1341
        %v1343 = vpop.f32.mrf.mxu0
        %1344 = vmatprep.mubr.bf16.mxu0 0
        %1345 = vmatmul.mubr.bf16.gmra.mxu0 %v1176
        %v1346 = vpop.f32.mrf.mxu0
        %v1347 = vadd.f32 %v1206, %v1346
        %v1348 = vpop.f32.mrf.mxu0
        %v1349 = vpop.f32.mrf.mxu0
        %v1350 = vadd.f32 %v1206, %v1349
        %v1351 = vpop.f32.mrf.mxu0
        %1352 = vmatprep.mubr.bf16.mxu0 0
        %1353 = vmatmul.mubr.bf16.gmra.mxu0 %v1177
        %v1354 = vpop.f32.mrf.mxu0
        %v1355 = vadd.f32 %v1206, %v1354
        %v1356 = vpop.f32.mrf.mxu0
        %v1357 = vpop.f32.mrf.mxu0
        %v1358 = vadd.f32 %v1206, %v1357
        %v1359 = vpop.f32.mrf.mxu0
        %1360 = vmatprep.mubr.bf16.mxu0 0
        %1361 = vmatmul.mubr.bf16.gmra.mxu0 %v1178
        %v1362 = vpop.f32.mrf.mxu0
        %v1363 = vadd.f32 %v1206, %v1362
        %v1364 = vpop.f32.mrf.mxu0
        %v1365 = vpop.f32.mrf.mxu0
        %v1366 = vadd.f32 %v1206, %v1365
        %v1367 = vpop.f32.mrf.mxu0
        %1368 = vmatprep.mubr.bf16.mxu0 0
        %1369 = vmatmul.mubr.bf16.gmra.mxu0 %v1179
        %v1370 = vpop.f32.mrf.mxu0
        %v1371 = vadd.f32 %v1206, %v1370
        %v1372 = vpop.f32.mrf.mxu0
        %v1373 = vpop.f32.mrf.mxu0
        %v1374 = vadd.f32 %v1206, %v1373
        %v1375 = vpop.f32.mrf.mxu0
        %1376 = vmatprep.mubr.bf16.mxu0 0
        %1377 = vmatmul.mubr.bf16.gmra.mxu0 %v1180
        %v1378 = vpop.f32.mrf.mxu0
        %v1379 = vadd.f32 %v1206, %v1378
        %v1380 = vpop.f32.mrf.mxu0
        %v1381 = vpop.f32.mrf.mxu0
        %v1382 = vadd.f32 %v1206, %v1381
        %v1383 = vpop.f32.mrf.mxu0
        %1384 = vmatprep.mubr.bf16.mxu0 0
        %1385 = vmatmul.mubr.bf16.gmra.mxu0 %v1181
        %v1386 = vpop.f32.mrf.mxu0
        %v1387 = vadd.f32 %v1206, %v1386
        %v1388 = vpop.f32.mrf.mxu0
        %v1389 = vpop.f32.mrf.mxu0
        %v1390 = vadd.f32 %v1206, %v1389
        %v1391 = vpop.f32.mrf.mxu0
        %1392 = vmatprep.mubr.bf16.mxu0 0
        %1393 = vmatmul.mubr.bf16.gmra.mxu0 %v1182
        %v1394 = vpop.f32.mrf.mxu0
        %v1395 = vadd.f32 %v1206, %v1394
        %v1396 = vpop.f32.mrf.mxu0
        %v1397 = vpop.f32.mrf.mxu0
        %v1398 = vadd.f32 %v1206, %v1397
        %v1399 = vpop.f32.mrf.mxu0
        %1400 = vmatprep.mubr.bf16.mxu0 0
        %1401 = vmatmul.mubr.bf16.gmra.mxu0 %v1183
        %v1402 = vpop.f32.mrf.mxu0
        %v1403 = vadd.f32 %v1206, %v1402
        %v1404 = vpop.f32.mrf.mxu0
        %v1405 = vpop.f32.mrf.mxu0
        %v1406 = vadd.f32 %v1206, %v1405
        %v1407 = vpop.f32.mrf.mxu0
        %1408 = vmatprep.mubr.bf16.mxu0 0
        %1409 = vmatmul.mubr.bf16.gmra.mxu0 %v1184
        %v1410 = vpop.f32.mrf.mxu0
        %v1411 = vadd.f32 %v1206, %v1410
        %v1412 = vpop.f32.mrf.mxu0
        %v1413 = vpop.f32.mrf.mxu0
        %v1414 = vadd.f32 %v1206, %v1413
        %v1415 = vpop.f32.mrf.mxu0
        %1416 = vdwg.mxu0
        %v1417 = vmax.f32 %v1291, 0.0
        %v1418 = vmax.f32 %v1294, 0.0
        %v1419 = vmax.f32 %v1299, 0.0
        %v1420 = vmax.f32 %v1302, 0.0
        %v1421 = vmax.f32 %v1307, 0.0
        %v1422 = vmax.f32 %v1310, 0.0
        %v1423 = vmax.f32 %v1315, 0.0
        %v1424 = vmax.f32 %v1318, 0.0
        %v1425 = vmax.f32 %v1323, 0.0
        %v1426 = vmax.f32 %v1326, 0.0
        %v1427 = vmax.f32 %v1331, 0.0
        %v1428 = vmax.f32 %v1334, 0.0
        %v1429 = vmax.f32 %v1339, 0.0
        %v1430 = vmax.f32 %v1342, 0.0
        %v1431 = vmax.f32 %v1347, 0.0
        %v1432 = vmax.f32 %v1350, 0.0
        %v1433 = vmax.f32 %v1355, 0.0
        %v1434 = vmax.f32 %v1358, 0.0
        %v1435 = vmax.f32 %v1363, 0.0
        %v1436 = vmax.f32 %v1366, 0.0
        %v1437 = vmax.f32 %v1371, 0.0
        %v1438 = vmax.f32 %v1374, 0.0
        %v1439 = vmax.f32 %v1379, 0.0
        %v1440 = vmax.f32 %v1382, 0.0
        %v1441 = vmax.f32 %v1387, 0.0
        %v1442 = vmax.f32 %v1390, 0.0
        %v1443 = vmax.f32 %v1395, 0.0
        %v1444 = vmax.f32 %v1398, 0.0
        %v1445 = vmax.f32 %v1403, 0.0
        %v1446 = vmax.f32 %v1406, 0.0
        %v1447 = vmax.f32 %v1411, 0.0
        %v1448 = vmax.f32 %v1414, 0.0
        %v1449 = vpack.c.bf16 %v1418, %v1417
        %v1450 = vpack.c.bf16 %v1420, %v1419
        %v1451 = vpack.c.bf16 %v1422, %v1421
        %v1452 = vpack.c.bf16 %v1424, %v1423
        %v1453 = vpack.c.bf16 %v1426, %v1425
        %v1454 = vpack.c.bf16 %v1428, %v1427
        %v1455 = vpack.c.bf16 %v1430, %v1429
        %v1456 = vpack.c.bf16 %v1432, %v1431
        %v1457 = vpack.c.bf16 %v1434, %v1433
        %v1458 = vpack.c.bf16 %v1436, %v1435
        %v1459 = vpack.c.bf16 %v1438, %v1437
        %v1460 = vpack.c.bf16 %v1440, %v1439
        %v1461 = vpack.c.bf16 %v1442, %v1441
        %v1462 = vpack.c.bf16 %v1444, %v1443
        %v1463 = vpack.c.bf16 %v1446, %v1445
        %v1464 = vpack.c.bf16 %v1448, %v1447
        %v1465 = vld [vmem:[%s5] sm:$0xf]
        %v1466 = vld [vmem:[%s5 + $0x4] sm:$0xf]
        %v1467 = vld [vmem:[%s5 + $0x8] sm:$0xf]
        %v1468 = vld [vmem:[%s5 + $0xc] sm:$0xf]
        %v1469 = vld [vmem:[%s5 + $0x10] sm:$0xf]
        %v1470 = vld [vmem:[%s5 + $0x14] sm:$0xf]
        %v1471 = vld [vmem:[%s5 + $0x18] sm:$0xf]
        %v1472 = vld [vmem:[%s5 + $0x1c] sm:$0xf]
        %v1473 = vld [vmem:[%s5 + $0x20] sm:$0xf]
        %v1474 = vld [vmem:[%s5 + $0x24] sm:$0xf]
        %v1475 = vld [vmem:[%s5 + $0x28] sm:$0xf]
        %v1476 = vld [vmem:[%s5 + $0x2c] sm:$0xf]
        %v1477 = vld [vmem:[%s5 + $0x30] sm:$0xf]
        %v1478 = vld [vmem:[%s5 + $0x34] sm:$0xf]
        %v1479 = vld [vmem:[%s5 + $0x38] sm:$0xf]
        %v1480 = vld [vmem:[%s5 + $0x3c] sm:$0xf]
        %v1481 = vld [vmem:[%s6] sm:$0x1]
        %v1483 = vlaneseq
        %v1484 = vshrl.u32 %v1483, 7
        %v1485 = vsub.s32 0, %v1484
        %v1486 = vrot.slane %v1481, %v1485
        %v1504 = vunpack.c.l.b16 %v1465
        %v1505 = vunpack.c.l.b16 %v1466
        %v1506 = vunpack.c.l.b16 %v1467
        %v1507 = vunpack.c.l.b16 %v1468
        %v1508 = vunpack.c.l.b16 %v1469
        %v1509 = vunpack.c.l.b16 %v1470
        %v1510 = vunpack.c.l.b16 %v1471
        %v1511 = vunpack.c.l.b16 %v1472
        %v1512 = vunpack.c.l.b16 %v1473
        %v1513 = vunpack.c.l.b16 %v1474
        %v1514 = vunpack.c.l.b16 %v1475
        %v1515 = vunpack.c.l.b16 %v1476
        %v1516 = vunpack.c.l.b16 %v1477
        %v1517 = vunpack.c.l.b16 %v1478
        %v1518 = vunpack.c.l.b16 %v1479
        %v1519 = vunpack.c.l.b16 %v1480
        %v1520 = vpack.c.b16 %v1505, %v1504
        %v1521 = vpack.c.b16 %v1507, %v1506
        %v1522 = vpack.c.b16 %v1509, %v1508
        %v1523 = vpack.c.b16 %v1511, %v1510
        %v1524 = vpack.c.b16 %v1513, %v1512
        %v1525 = vpack.c.b16 %v1515, %v1514
        %v1526 = vpack.c.b16 %v1517, %v1516
        %v1527 = vpack.c.b16 %v1519, %v1518
        %1536 = vmatprep.subr.bf16.mxu0 0
        %1537 = vmatpush1.bf16.msra.mxu0 %v1527
        %1538 = vmatprep.subr.bf16.mxu0 0
        %1539 = vmatpush1.bf16.msra.mxu0 %v1526
        %1540 = vmatprep.subr.bf16.mxu0 0
        %1541 = vmatpush1.bf16.msra.mxu0 %v1525
        %1542 = vmatprep.subr.bf16.mxu0 0
        %1543 = vmatpush1.bf16.msra.mxu0 %v1524
        %1544 = vmatprep.subr.bf16.mxu0 0
        %1545 = vmatpush1.bf16.msra.mxu0 %v1523
        %1546 = vmatprep.subr.bf16.mxu0 0
        %1547 = vmatpush1.bf16.msra.mxu0 %v1522
        %1548 = vmatprep.subr.bf16.mxu0 0
        %1549 = vmatpush1.bf16.msra.mxu0 %v1521
        %1550 = vmatprep.subr.bf16.mxu0 0
        %1551 = vmatpush1.bf16.msra.mxu0 %v1520
        %1552 = vmatprep.subr.bf16.mxu0 0
        %1553 = vmatpush2.bf16.msra.mxu0 0
        %1554 = vmatprep.subr.bf16.mxu0 0
        %1555 = vmatpush2.bf16.msra.mxu0 0
        %1556 = vmatprep.subr.bf16.mxu0 0
        %1557 = vmatpush2.bf16.msra.mxu0 0
        %1558 = vmatprep.subr.bf16.mxu0 0
        %1559 = vmatpush2.bf16.msra.mxu0 0
        %1560 = vmatprep.subr.bf16.mxu0 0
        %1561 = vmatpush2.bf16.msra.mxu0 0
        %1562 = vmatprep.subr.bf16.mxu0 0
        %1563 = vmatpush2.bf16.msra.mxu0 0
        %1564 = vmatprep.subr.bf16.mxu0 0
        %1565 = vmatpush2.bf16.msra.mxu0 0
        %1566 = vmatprep.subr.bf16.mxu0 0
        %1567 = vmatpush2.bf16.msra.mxu0 0
        %1568 = vmatprep.mubr.bf16.mxu0 0
        %1569 = vmatmul.mubr.bf16.gmra.mxu0 %v1449
        %v1570 = vpop.f32.mrf.mxu0
        %v1571 = vadd.f32 %v1486, %v1570
        %v1572 = vpop.f32.mrf.mxu0
        %v1573 = vpop.f32.mrf.mxu0
        %v1574 = vadd.f32 %v1486, %v1573
        %v1575 = vpop.f32.mrf.mxu0
        %1576 = vmatprep.mubr.bf16.mxu0 0
        %1577 = vmatmul.mubr.bf16.gmra.mxu0 %v1450
        %v1578 = vpop.f32.mrf.mxu0
        %v1579 = vadd.f32 %v1486, %v1578
        %v1580 = vpop.f32.mrf.mxu0
        %v1581 = vpop.f32.mrf.mxu0
        %v1582 = vadd.f32 %v1486, %v1581
        %v1583 = vpop.f32.mrf.mxu0
        %1584 = vmatprep.mubr.bf16.mxu0 0
        %1585 = vmatmul.mubr.bf16.gmra.mxu0 %v1451
        %v1586 = vpop.f32.mrf.mxu0
        %v1587 = vadd.f32 %v1486, %v1586
        %v1588 = vpop.f32.mrf.mxu0
        %v1589 = vpop.f32.mrf.mxu0
        %v1590 = vadd.f32 %v1486, %v1589
        %v1591 = vpop.f32.mrf.mxu0
        %1592 = vmatprep.mubr.bf16.mxu0 0
        %1593 = vmatmul.mubr.bf16.gmra.mxu0 %v1452
        %v1594 = vpop.f32.mrf.mxu0
        %v1595 = vadd.f32 %v1486, %v1594
        %v1596 = vpop.f32.mrf.mxu0
        %v1597 = vpop.f32.mrf.mxu0
        %v1598 = vadd.f32 %v1486, %v1597
        %v1599 = vpop.f32.mrf.mxu0
        %1600 = vmatprep.mubr.bf16.mxu0 0
        %1601 = vmatmul.mubr.bf16.gmra.mxu0 %v1453
        %v1602 = vpop.f32.mrf.mxu0
        %v1603 = vadd.f32 %v1486, %v1602
        %v1604 = vpop.f32.mrf.mxu0
        %v1605 = vpop.f32.mrf.mxu0
        %v1606 = vadd.f32 %v1486, %v1605
        %v1607 = vpop.f32.mrf.mxu0
        %1608 = vmatprep.mubr.bf16.mxu0 0
        %1609 = vmatmul.mubr.bf16.gmra.mxu0 %v1454
        %v1610 = vpop.f32.mrf.mxu0
        %v1611 = vadd.f32 %v1486, %v1610
        %v1612 = vpop.f32.mrf.mxu0
        %v1613 = vpop.f32.mrf.mxu0
        %v1614 = vadd.f32 %v1486, %v1613
        %v1615 = vpop.f32.mrf.mxu0
        %1616 = vmatprep.mubr.bf16.mxu0 0
        %1617 = vmatmul.mubr.bf16.gmra.mxu0 %v1455
        %v1618 = vpop.f32.mrf.mxu0
        %v1619 = vadd.f32 %v1486, %v1618
        %v1620 = vpop.f32.mrf.mxu0
        %v1621 = vpop.f32.mrf.mxu0
        %v1622 = vadd.f32 %v1486, %v1621
        %v1623 = vpop.f32.mrf.mxu0
        %1624 = vmatprep.mubr.bf16.mxu0 0
        %1625 = vmatmul.mubr.bf16.gmra.mxu0 %v1456
        %v1626 = vpop.f32.mrf.mxu0
        %v1627 = vadd.f32 %v1486, %v1626
        %v1628 = vpop.f32.mrf.mxu0
        %v1629 = vpop.f32.mrf.mxu0
        %v1630 = vadd.f32 %v1486, %v1629
        %v1631 = vpop.f32.mrf.mxu0
        %1632 = vmatprep.mubr.bf16.mxu0 0
        %1633 = vmatmul.mubr.bf16.gmra.mxu0 %v1457
        %v1634 = vpop.f32.mrf.mxu0
        %v1635 = vadd.f32 %v1486, %v1634
        %v1636 = vpop.f32.mrf.mxu0
        %v1637 = vpop.f32.mrf.mxu0
        %v1638 = vadd.f32 %v1486, %v1637
        %v1639 = vpop.f32.mrf.mxu0
        %1640 = vmatprep.mubr.bf16.mxu0 0
        %1641 = vmatmul.mubr.bf16.gmra.mxu0 %v1458
        %v1642 = vpop.f32.mrf.mxu0
        %v1643 = vadd.f32 %v1486, %v1642
        %v1644 = vpop.f32.mrf.mxu0
        %v1645 = vpop.f32.mrf.mxu0
        %v1646 = vadd.f32 %v1486, %v1645
        %v1647 = vpop.f32.mrf.mxu0
        %1648 = vmatprep.mubr.bf16.mxu0 0
        %1649 = vmatmul.mubr.bf16.gmra.mxu0 %v1459
        %v1650 = vpop.f32.mrf.mxu0
        %v1651 = vadd.f32 %v1486, %v1650
        %v1652 = vpop.f32.mrf.mxu0
        %v1653 = vpop.f32.mrf.mxu0
        %v1654 = vadd.f32 %v1486, %v1653
        %v1655 = vpop.f32.mrf.mxu0
        %1656 = vmatprep.mubr.bf16.mxu0 0
        %1657 = vmatmul.mubr.bf16.gmra.mxu0 %v1460
        %v1658 = vpop.f32.mrf.mxu0
        %v1659 = vadd.f32 %v1486, %v1658
        %v1660 = vpop.f32.mrf.mxu0
        %v1661 = vpop.f32.mrf.mxu0
        %v1662 = vadd.f32 %v1486, %v1661
        %v1663 = vpop.f32.mrf.mxu0
        %1664 = vmatprep.mubr.bf16.mxu0 0
        %1665 = vmatmul.mubr.bf16.gmra.mxu0 %v1461
        %v1666 = vpop.f32.mrf.mxu0
        %v1667 = vadd.f32 %v1486, %v1666
        %v1668 = vpop.f32.mrf.mxu0
        %v1669 = vpop.f32.mrf.mxu0
        %v1670 = vadd.f32 %v1486, %v1669
        %v1671 = vpop.f32.mrf.mxu0
        %1672 = vmatprep.mubr.bf16.mxu0 0
        %1673 = vmatmul.mubr.bf16.gmra.mxu0 %v1462
        %v1674 = vpop.f32.mrf.mxu0
        %v1675 = vadd.f32 %v1486, %v1674
        %v1676 = vpop.f32.mrf.mxu0
        %v1677 = vpop.f32.mrf.mxu0
        %v1678 = vadd.f32 %v1486, %v1677
        %v1679 = vpop.f32.mrf.mxu0
        %1680 = vmatprep.mubr.bf16.mxu0 0
        %1681 = vmatmul.mubr.bf16.gmra.mxu0 %v1463
        %v1682 = vpop.f32.mrf.mxu0
        %v1683 = vadd.f32 %v1486, %v1682
        %v1684 = vpop.f32.mrf.mxu0
        %v1685 = vpop.f32.mrf.mxu0
        %v1686 = vadd.f32 %v1486, %v1685
        %v1687 = vpop.f32.mrf.mxu0
        %1688 = vmatprep.mubr.bf16.mxu0 0
        %1689 = vmatmul.mubr.bf16.gmra.mxu0 %v1464
        %v1690 = vpop.f32.mrf.mxu0
        %v1691 = vadd.f32 %v1486, %v1690
        %v1692 = vpop.f32.mrf.mxu0
        %v1693 = vpop.f32.mrf.mxu0
        %v1694 = vadd.f32 %v1486, %v1693
        %v1695 = vpop.f32.mrf.mxu0
        %1696 = vdwg.mxu0
        %1697 = vmax.xlane.f32.xlu0 %v1571
        %v1698 = vpop.xlane.xlu0 %1697
        %1699 = vmax.xlane.f32.xlu0 %v1574
        %v1700 = vpop.xlane.xlu0 %1699
        %1701 = vmax.xlane.f32.xlu0 %v1579
        %v1702 = vpop.xlane.xlu0 %1701
        %1703 = vmax.xlane.f32.xlu0 %v1582
        %v1704 = vpop.xlane.xlu0 %1703
        %1705 = vmax.xlane.f32.xlu0 %v1587
        %v1706 = vpop.xlane.xlu0 %1705
        %1707 = vmax.xlane.f32.xlu0 %v1590
        %v1708 = vpop.xlane.xlu0 %1707
        %1709 = vmax.xlane.f32.xlu0 %v1595
        %v1710 = vpop.xlane.xlu0 %1709
        %1711 = vmax.xlane.f32.xlu0 %v1598
        %v1712 = vpop.xlane.xlu0 %1711
        %1713 = vmax.xlane.f32.xlu0 %v1603
        %v1714 = vpop.xlane.xlu0 %1713
        %1715 = vmax.xlane.f32.xlu0 %v1606
        %v1716 = vpop.xlane.xlu0 %1715
        %1717 = vmax.xlane.f32.xlu0 %v1611
        %v1718 = vpop.xlane.xlu0 %1717
        %1719 = vmax.xlane.f32.xlu0 %v1614
        %v1720 = vpop.xlane.xlu0 %1719
        %1721 = vmax.xlane.f32.xlu0 %v1619
        %v1722 = vpop.xlane.xlu0 %1721
        %1723 = vmax.xlane.f32.xlu0 %v1622
        %v1724 = vpop.xlane.xlu0 %1723
        %1725 = vmax.xlane.f32.xlu0 %v1627
        %v1726 = vpop.xlane.xlu0 %1725
        %1727 = vmax.xlane.f32.xlu0 %v1630
        %v1728 = vpop.xlane.xlu0 %1727
        %1729 = vmax.xlane.f32.xlu0 %v1635
        %v1730 = vpop.xlane.xlu0 %1729
        %1731 = vmax.xlane.f32.xlu0 %v1638
        %v1732 = vpop.xlane.xlu0 %1731
        %1733 = vmax.xlane.f32.xlu0 %v1643
        %v1734 = vpop.xlane.xlu0 %1733
        %1735 = vmax.xlane.f32.xlu0 %v1646
        %v1736 = vpop.xlane.xlu0 %1735
        %1737 = vmax.xlane.f32.xlu0 %v1651
        %v1738 = vpop.xlane.xlu0 %1737
        %1739 = vmax.xlane.f32.xlu0 %v1654
        %v1740 = vpop.xlane.xlu0 %1739
        %1741 = vmax.xlane.f32.xlu0 %v1659
        %v1742 = vpop.xlane.xlu0 %1741
        %1743 = vmax.xlane.f32.xlu0 %v1662
        %v1744 = vpop.xlane.xlu0 %1743
        %1745 = vmax.xlane.f32.xlu0 %v1667
        %v1746 = vpop.xlane.xlu0 %1745
        %1747 = vmax.xlane.f32.xlu0 %v1670
        %v1748 = vpop.xlane.xlu0 %1747
        %1749 = vmax.xlane.f32.xlu0 %v1675
        %v1750 = vpop.xlane.xlu0 %1749
        %1751 = vmax.xlane.f32.xlu0 %v1678
        %v1752 = vpop.xlane.xlu0 %1751
        %1753 = vmax.xlane.f32.xlu0 %v1683
        %v1754 = vpop.xlane.xlu0 %1753
        %1755 = vmax.xlane.f32.xlu0 %v1686
        %v1756 = vpop.xlane.xlu0 %1755
        %1757 = vmax.xlane.f32.xlu0 %v1691
        %v1758 = vpop.xlane.xlu0 %1757
        %1759 = vmax.xlane.f32.xlu0 %v1694
        %v1760 = vpop.xlane.xlu0 %1759
        %v1761 = vsub.f32 %v1571, %v1698
        %v1762 = vsub.f32 %v1574, %v1700
        %v1763 = vsub.f32 %v1579, %v1702
        %v1764 = vsub.f32 %v1582, %v1704
        %v1765 = vsub.f32 %v1587, %v1706
        %v1766 = vsub.f32 %v1590, %v1708
        %v1767 = vsub.f32 %v1595, %v1710
        %v1768 = vsub.f32 %v1598, %v1712
        %v1769 = vsub.f32 %v1603, %v1714
        %v1770 = vsub.f32 %v1606, %v1716
        %v1771 = vsub.f32 %v1611, %v1718
        %v1772 = vsub.f32 %v1614, %v1720
        %v1773 = vsub.f32 %v1619, %v1722
        %v1774 = vsub.f32 %v1622, %v1724
        %v1775 = vsub.f32 %v1627, %v1726
        %v1776 = vsub.f32 %v1630, %v1728
        %v1777 = vsub.f32 %v1635, %v1730
        %v1778 = vsub.f32 %v1638, %v1732
        %v1779 = vsub.f32 %v1643, %v1734
        %v1780 = vsub.f32 %v1646, %v1736
        %v1781 = vsub.f32 %v1651, %v1738
        %v1782 = vsub.f32 %v1654, %v1740
        %v1783 = vsub.f32 %v1659, %v1742
        %v1784 = vsub.f32 %v1662, %v1744
        %v1785 = vsub.f32 %v1667, %v1746
        %v1786 = vsub.f32 %v1670, %v1748
        %v1787 = vsub.f32 %v1675, %v1750
        %v1788 = vsub.f32 %v1678, %v1752
        %v1789 = vsub.f32 %v1683, %v1754
        %v1790 = vsub.f32 %v1686, %v1756
        %v1791 = vsub.f32 %v1691, %v1758
        %v1792 = vsub.f32 %v1694, %v1760
        %v1793 = vmul.f32 %v1761, 1.442695
        %v1794 = vpow.pop %v1793
        %v1795 = vmul.f32 %v1762, 1.442695
        %v1796 = vpow.pop %v1795
        %v1797 = vmul.f32 %v1763, 1.442695
        %v1798 = vpow.pop %v1797
        %v1799 = vmul.f32 %v1764, 1.442695
        %v1800 = vpow.pop %v1799
        %v1801 = vmul.f32 %v1765, 1.442695
        %v1802 = vpow.pop %v1801
        %v1803 = vmul.f32 %v1766, 1.442695
        %v1804 = vpow.pop %v1803
        %v1805 = vmul.f32 %v1767, 1.442695
        %v1806 = vpow.pop %v1805
        %v1807 = vmul.f32 %v1768, 1.442695
        %v1808 = vpow.pop %v1807
        %v1809 = vmul.f32 %v1769, 1.442695
        %v1810 = vpow.pop %v1809
        %v1811 = vmul.f32 %v1770, 1.442695
        %v1812 = vpow.pop %v1811
        %v1813 = vmul.f32 %v1771, 1.442695
        %v1814 = vpow.pop %v1813
        %v1815 = vmul.f32 %v1772, 1.442695
        %v1816 = vpow.pop %v1815
        %v1817 = vmul.f32 %v1773, 1.442695
        %v1818 = vpow.pop %v1817
        %v1819 = vmul.f32 %v1774, 1.442695
        %v1820 = vpow.pop %v1819
        %v1821 = vmul.f32 %v1775, 1.442695
        %v1822 = vpow.pop %v1821
        %v1823 = vmul.f32 %v1776, 1.442695
        %v1824 = vpow.pop %v1823
        %v1825 = vmul.f32 %v1777, 1.442695
        %v1826 = vpow.pop %v1825
        %v1827 = vmul.f32 %v1778, 1.442695
        %v1828 = vpow.pop %v1827
        %v1829 = vmul.f32 %v1779, 1.442695
        %v1830 = vpow.pop %v1829
        %v1831 = vmul.f32 %v1780, 1.442695
        %v1832 = vpow.pop %v1831
        %v1833 = vmul.f32 %v1781, 1.442695
        %v1834 = vpow.pop %v1833
        %v1835 = vmul.f32 %v1782, 1.442695
        %v1836 = vpow.pop %v1835
        %v1837 = vmul.f32 %v1783, 1.442695
        %v1838 = vpow.pop %v1837
        %v1839 = vmul.f32 %v1784, 1.442695
        %v1840 = vpow.pop %v1839
        %v1841 = vmul.f32 %v1785, 1.442695
        %v1842 = vpow.pop %v1841
        %v1843 = vmul.f32 %v1786, 1.442695
        %v1844 = vpow.pop %v1843
        %v1845 = vmul.f32 %v1787, 1.442695
        %v1846 = vpow.pop %v1845
        %v1847 = vmul.f32 %v1788, 1.442695
        %v1848 = vpow.pop %v1847
        %v1849 = vmul.f32 %v1789, 1.442695
        %v1850 = vpow.pop %v1849
        %v1851 = vmul.f32 %v1790, 1.442695
        %v1852 = vpow.pop %v1851
        %v1853 = vmul.f32 %v1791, 1.442695
        %v1854 = vpow.pop %v1853
        %v1855 = vmul.f32 %v1792, 1.442695
        %v1856 = vpow.pop %v1855
        %1857 = vadd.xlane.f32.xlu0 %v1794
        %v1858 = vpop.xlane.xlu0 %1857
        %1859 = vadd.xlane.f32.xlu0 %v1796
        %v1860 = vpop.xlane.xlu0 %1859
        %1861 = vadd.xlane.f32.xlu0 %v1798
        %v1862 = vpop.xlane.xlu0 %1861
        %1863 = vadd.xlane.f32.xlu0 %v1800
        %v1864 = vpop.xlane.xlu0 %1863
        %1865 = vadd.xlane.f32.xlu0 %v1802
        %v1866 = vpop.xlane.xlu0 %1865
        %1867 = vadd.xlane.f32.xlu0 %v1804
        %v1868 = vpop.xlane.xlu0 %1867
        %1869 = vadd.xlane.f32.xlu0 %v1806
        %v1870 = vpop.xlane.xlu0 %1869
        %1871 = vadd.xlane.f32.xlu0 %v1808
        %v1872 = vpop.xlane.xlu0 %1871
        %1873 = vadd.xlane.f32.xlu0 %v1810
        %v1874 = vpop.xlane.xlu0 %1873
        %1875 = vadd.xlane.f32.xlu0 %v1812
        %v1876 = vpop.xlane.xlu0 %1875
        %1877 = vadd.xlane.f32.xlu0 %v1814
        %v1878 = vpop.xlane.xlu0 %1877
        %1879 = vadd.xlane.f32.xlu0 %v1816
        %v1880 = vpop.xlane.xlu0 %1879
        %1881 = vadd.xlane.f32.xlu0 %v1818
        %v1882 = vpop.xlane.xlu0 %1881
        %1883 = vadd.xlane.f32.xlu0 %v1820
        %v1884 = vpop.xlane.xlu0 %1883
        %1885 = vadd.xlane.f32.xlu0 %v1822
        %v1886 = vpop.xlane.xlu0 %1885
        %1887 = vadd.xlane.f32.xlu0 %v1824
        %v1888 = vpop.xlane.xlu0 %1887
        %1889 = vadd.xlane.f32.xlu0 %v1826
        %v1890 = vpop.xlane.xlu0 %1889
        %1891 = vadd.xlane.f32.xlu0 %v1828
        %v1892 = vpop.xlane.xlu0 %1891
        %1893 = vadd.xlane.f32.xlu0 %v1830
        %v1894 = vpop.xlane.xlu0 %1893
        %1895 = vadd.xlane.f32.xlu0 %v1832
        %v1896 = vpop.xlane.xlu0 %1895
        %1897 = vadd.xlane.f32.xlu0 %v1834
        %v1898 = vpop.xlane.xlu0 %1897
        %1899 = vadd.xlane.f32.xlu0 %v1836
        %v1900 = vpop.xlane.xlu0 %1899
        %1901 = vadd.xlane.f32.xlu0 %v1838
        %v1902 = vpop.xlane.xlu0 %1901
        %1903 = vadd.xlane.f32.xlu0 %v1840
        %v1904 = vpop.xlane.xlu0 %1903
        %1905 = vadd.xlane.f32.xlu0 %v1842
        %v1906 = vpop.xlane.xlu0 %1905
        %1907 = vadd.xlane.f32.xlu0 %v1844
        %v1908 = vpop.xlane.xlu0 %1907
        %1909 = vadd.xlane.f32.xlu0 %v1846
        %v1910 = vpop.xlane.xlu0 %1909
        %1911 = vadd.xlane.f32.xlu0 %v1848
        %v1912 = vpop.xlane.xlu0 %1911
        %1913 = vadd.xlane.f32.xlu0 %v1850
        %v1914 = vpop.xlane.xlu0 %1913
        %1915 = vadd.xlane.f32.xlu0 %v1852
        %v1916 = vpop.xlane.xlu0 %1915
        %1917 = vadd.xlane.f32.xlu0 %v1854
        %v1918 = vpop.xlane.xlu0 %1917
        %1919 = vadd.xlane.f32.xlu0 %v1856
        %v1920 = vpop.xlane.xlu0 %1919
        %v1921 = vrcp.pop %v1858
        %v1922 = vrcp.pop %v1860
        %v1923 = vrcp.pop %v1862
        %v1924 = vrcp.pop %v1864
        %v1925 = vrcp.pop %v1866
        %v1926 = vrcp.pop %v1868
        %v1927 = vrcp.pop %v1870
        %v1928 = vrcp.pop %v1872
        %v1929 = vrcp.pop %v1874
        %v1930 = vrcp.pop %v1876
        %v1931 = vrcp.pop %v1878
        %v1932 = vrcp.pop %v1880
        %v1933 = vrcp.pop %v1882
        %v1934 = vrcp.pop %v1884
        %v1935 = vrcp.pop %v1886
        %v1936 = vrcp.pop %v1888
        %v1937 = vrcp.pop %v1890
        %v1938 = vrcp.pop %v1892
        %v1939 = vrcp.pop %v1894
        %v1940 = vrcp.pop %v1896
        %v1941 = vrcp.pop %v1898
        %v1942 = vrcp.pop %v1900
        %v1943 = vrcp.pop %v1902
        %v1944 = vrcp.pop %v1904
        %v1945 = vrcp.pop %v1906
        %v1946 = vrcp.pop %v1908
        %v1947 = vrcp.pop %v1910
        %v1948 = vrcp.pop %v1912
        %v1949 = vrcp.pop %v1914
        %v1950 = vrcp.pop %v1916
        %v1951 = vrcp.pop %v1918
        %v1952 = vrcp.pop %v1920
        %v1953 = vmul.f32 %v1794, %v1921
        %v1954 = vmul.f32 %v1796, %v1922
        %v1955 = vmul.f32 %v1798, %v1923
        %v1956 = vmul.f32 %v1800, %v1924
        %v1957 = vmul.f32 %v1802, %v1925
        %v1958 = vmul.f32 %v1804, %v1926
        %v1959 = vmul.f32 %v1806, %v1927
        %v1960 = vmul.f32 %v1808, %v1928
        %v1961 = vmul.f32 %v1810, %v1929
        %v1962 = vmul.f32 %v1812, %v1930
        %v1963 = vmul.f32 %v1814, %v1931
        %v1964 = vmul.f32 %v1816, %v1932
        %v1965 = vmul.f32 %v1818, %v1933
        %v1966 = vmul.f32 %v1820, %v1934
        %v1967 = vmul.f32 %v1822, %v1935
        %v1968 = vmul.f32 %v1824, %v1936
        %v1969 = vmul.f32 %v1826, %v1937
        %v1970 = vmul.f32 %v1828, %v1938
        %v1971 = vmul.f32 %v1830, %v1939
        %v1972 = vmul.f32 %v1832, %v1940
        %v1973 = vmul.f32 %v1834, %v1941
        %v1974 = vmul.f32 %v1836, %v1942
        %v1975 = vmul.f32 %v1838, %v1943
        %v1976 = vmul.f32 %v1840, %v1944
        %v1977 = vmul.f32 %v1842, %v1945
        %v1978 = vmul.f32 %v1844, %v1946
        %v1979 = vmul.f32 %v1846, %v1947
        %v1980 = vmul.f32 %v1848, %v1948
        %v1981 = vmul.f32 %v1850, %v1949
        %v1982 = vmul.f32 %v1852, %v1950
        %v1983 = vmul.f32 %v1854, %v1951
        %v1984 = vmul.f32 %v1856, %v1952
        %1985 = vst [vmem:[%s272] sm:$0xff] %v1953
        %1986 = vst [vmem:[%s272 + $0x8] sm:$0xff] %v1954
        %1987 = vst [vmem:[%s272 + $0x10] sm:$0xff] %v1955
        %1988 = vst [vmem:[%s272 + $0x18] sm:$0xff] %v1956
        %1989 = vst [vmem:[%s272 + $0x20] sm:$0xff] %v1957
        %1990 = vst [vmem:[%s272 + $0x28] sm:$0xff] %v1958
        %1991 = vst [vmem:[%s272 + $0x30] sm:$0xff] %v1959
        %1992 = vst [vmem:[%s272 + $0x38] sm:$0xff] %v1960
        %1993 = vst [vmem:[%s272 + $0x40] sm:$0xff] %v1961
        %1994 = vst [vmem:[%s272 + $0x48] sm:$0xff] %v1962
        %1995 = vst [vmem:[%s272 + $0x50] sm:$0xff] %v1963
        %1996 = vst [vmem:[%s272 + $0x58] sm:$0xff] %v1964
        %1997 = vst [vmem:[%s272 + $0x60] sm:$0xff] %v1965
        %1998 = vst [vmem:[%s272 + $0x68] sm:$0xff] %v1966
        %1999 = vst [vmem:[%s272 + $0x70] sm:$0xff] %v1967
        %2000 = vst [vmem:[%s272 + $0x78] sm:$0xff] %v1968
        %2001 = vst [vmem:[%s272 + $0x80] sm:$0xff] %v1969
        %2002 = vst [vmem:[%s272 + $0x88] sm:$0xff] %v1970
        %2003 = vst [vmem:[%s272 + $0x90] sm:$0xff] %v1971
        %2004 = vst [vmem:[%s272 + $0x98] sm:$0xff] %v1972
        %2005 = vst [vmem:[%s272 + $0xa0] sm:$0xff] %v1973
        %2006 = vst [vmem:[%s272 + $0xa8] sm:$0xff] %v1974
        %2007 = vst [vmem:[%s272 + $0xb0] sm:$0xff] %v1975
        %2008 = vst [vmem:[%s272 + $0xb8] sm:$0xff] %v1976
        %2009 = vst [vmem:[%s272 + $0xc0] sm:$0xff] %v1977
        %2010 = vst [vmem:[%s272 + $0xc8] sm:$0xff] %v1978
        %2011 = vst [vmem:[%s272 + $0xd0] sm:$0xff] %v1979
        %2012 = vst [vmem:[%s272 + $0xd8] sm:$0xff] %v1980
        %2013 = vst [vmem:[%s272 + $0xe0] sm:$0xff] %v1981
        %2014 = vst [vmem:[%s272 + $0xe8] sm:$0xff] %v1982
        %2015 = vst [vmem:[%s272 + $0xf0] sm:$0xff] %v1983
        %2016 = vst [vmem:[%s272 + $0xf8] sm:$0xff] %v1984
        %s2017 = sand.u32 %s181, 1
        %s2018 = scalar_lea.sflag [#allocation3], %s2017
        %s2019 = sand.u32 %s181, 1
        %s2020 = smul.addr %s2019, 256
        %s2021 = scalar_lea.vmem [#allocation2], %s2020
        // Predicated region
        $region49: #{tpu_custom_call.1} parent=47 // pred_check
          %p2022 = pneg %p191
        $region50: #{tpu_custom_call.1} parent=47 // pred_check_branch
          %2024 = sbr.rel (%p2022) target = $region52
        $region51: #{tpu_custom_call.1} parent=47 // pred_region
          %s2025 = smul.u32 32, %s21
          %s2027 = ssub.s32 4096, 4096
          %2028 = vsyncadd %s2018, %s2027
          %s2029 = smul.addr %s2025, 128
          %s2030 = scalar_lea.hbm %s7, %s2029
          %s2031 = sshll.u32 %s2021, 4
          %s2032 = int_to_ptr.vmem [resolvable:$true] %s2031
          %2037 = dma.vmem_to_hbm [thread:$0]  %s2032, 4096, %s2030, %s2018, 128, 128, 8
        $region52: #{tpu_custom_call.1} parent=47 // pred_fallthru
          _
      $region48: #{tpu_custom_call.1} parent=5 // pred_fallthru
        _
      %p2038 = scmp.le.s32.totalorder 2, %s16
      // Predicated region
      $region53: #{tpu_custom_call.1} parent=5 // pred_check
        %p2039 = pneg %p2038
      $region54: #{tpu_custom_call.1} parent=5 // pred_check_branch
        %2041 = sbr.rel (%p2039) target = $region56
      $region55: #{tpu_custom_call.1} parent=5 // pred_region
        %s2042 = ssub.s32 %s16, 2
        // Predicated region
        $region57: #{tpu_custom_call.1} parent=55 // pred_check
          %p2043 = pneg %p197
        $region58: #{tpu_custom_call.1} parent=55 // pred_check_branch
          %2045 = sbr.rel (%p2043) target = $region60
        $region59: #{tpu_custom_call.1} parent=55 // pred_region
          %s2046 = sand.u32 %s182, 1
          %s2047 = scalar_lea.sflag [#allocation3], %s2046
          %s2048 = sand.u32 %s182, 1
          %s2049 = smul.addr %s2048, 256
          %s2050 = scalar_lea.vmem [#allocation2], %s2049
          %2051 = dma.done %s2047, 4096
        $region60: #{tpu_custom_call.1} parent=55 // pred_fallthru
          _
      $region56: #{tpu_custom_call.1} parent=5 // pred_fallthru
        _
    $region6: #{tpu_custom_call.1} parent=1 // loop_footer
      %s20 = sadd.s32 1, %s16
    $region7: #{tpu_custom_call.1} parent=1 // loop_footer_branch
      %15 = sbr.rel target = $region3
    $region8: #{tpu_custom_call.1} parent=1 // loop_exit
      _
    %2052 = vsyncpa [#allocation3], 1
    %s2053 = scalar_lea.sflag [#allocation3], 1
    %2054 = vsyncpa %s2053, 1

</llo_original>
